<compile_context>
chip_gen: v7x
topology: tpu7x:2x2x1
jax: 0.10.0
libtpu: 0.0.40
codegen_flags: <defaults>
</compile_context>

<pallas_src>
import functools

import jax
import jax.numpy as jnp
from jax import lax
from jax.experimental import pallas as pl
from jax.experimental.pallas import tpu as pltpu

INPUT_SIZE = 5
HIDDEN = 32          # small synthetic hidden_size; 4*H == 128 -> one lane tile
NUM_LAYERS = 2
NUM_HEADS = 5        # soc, voltage, temperature, soh, rul


def _lstm_recurrence_kernel(pre1_ref, wcomb_ref, b2_ref, h0_ref, c0_ref,
                            h2_ref, hn_ref, cn_ref, *, group):
    """One grid step == one time-chunk of the 2-layer LSTM recurrence.

    pre1_ref : (Tc, B, 4H)       x @ W_ih1 + (b_ih1 + b_hh1)   (hoisted in wrapper)
    wcomb_ref: (2H, 8H)          [[W_hh1, W_ih2], [0, W_hh2]]  block-structured
    b2_ref   : (1, 4H)           b_ih2 + b_hh2
    h0/c0    : (2, B, H)         initial hidden/cell state
    h2_ref   : (Tc//g, B, g*H)   layer-2 hidden, `group` steps packed per lane row
    hn/cn    : (2, B, H)         final state outputs; also the cross-chunk carrier
    """
    H = HIDDEN
    Tc = pre1_ref.shape[0]
    B = pre1_ref.shape[1]
    n_groups = Tc // group
    c_idx = pl.program_id(0)

    @pl.when(c_idx == 0)
    def _init():
        hn_ref[...] = h0_ref[...]
        cn_ref[...] = c0_ref[...]

    # Hoist weight load and bias broadcast out of the unrolled time loop
    # (JAX does not CSE broadcast_in_dim).
    wcomb = wcomb_ref[...]                                    # (2H, 8H)
    b2b = jnp.broadcast_to(b2_ref[...], (B, 4 * H))

    def gates(g):
        # One sigmoid + one tanh push on the whole (B, 4H) vreg, then slice.
        # PyTorch gate order (i, f, g, o).
        sg = jax.nn.sigmoid(g)
        tg = jnp.tanh(g)
        return sg[:, :H], sg[:, H:2 * H], tg[:, 2 * H:3 * H], sg[:, 3 * H:]

    # Chunk boundary: recompute the layer-1 recurrent term for this chunk's
    # first step from the carried hidden state (wcomb[:H, :4H] == W_hh1).
    h1 = hn_ref[0]
    h2 = hn_ref[1]
    c1 = cn_ref[0]
    c2 = cn_ref[1]
    rec1 = jnp.dot(h1, wcomb[:H, :4 * H], preferred_element_type=jnp.float32)

    def group_step(k, carry):
        rec1, h1, c1, h2, c2 = carry
        packed = []
        for j in range(group):
            t = k * group + j
            # Layer 1: recurrent term already produced by the previous step's
            # fused matmul -> only VPU/EUP work on the critical path here.
            g1 = pre1_ref[t] + rec1
            i1, f1, gg1, o1 = gates(g1)
            c1 = f1 * c1 + i1 * gg1
            h1 = o1 * jnp.tanh(c1)
            # ONE fused MXU push per step:
            #   [h1(t) | h2(t-1)] @ [[W_hh1, W_ih2], [0, W_hh2]]
            #   lanes [:4H] = h1(t) @ W_hh1                 (g1 recurrent, t+1)
            #   lanes [4H:] = h1(t)@W_ih2 + h2(t-1)@W_hh2   (g2 pre-act,   t)
            fused = jnp.dot(jnp.concatenate([h1, h2], axis=-1), wcomb,
                            preferred_element_type=jnp.float32)
            rec1 = fused[:, :4 * H]
            # TODO(synk): nn.LSTM dropout(p=0.2) between layers applies only in
            # training mode; eval-mode semantics (no dropout) implemented here.
            g2 = fused[:, 4 * H:] + b2b
            i2, f2, gg2, o2 = gates(g2)
            c2 = f2 * c2 + i2 * gg2
            h2 = o2 * jnp.tanh(c2)
            packed.append(h2)
        # Lane-dense writeback: `group` timesteps -> one full-width store.
        h2_ref[k] = jnp.concatenate(packed, axis=-1).astype(h2_ref.dtype)
        return rec1, h1, c1, h2, c2

    _, h1, c1, h2, c2 = lax.fori_loop(0, n_groups, group_step,
                                      (rec1, h1, c1, h2, c2), unroll=True)

    # Persist state for the next chunk / the final (h_n, c_n) outputs.
    hn_ref[0] = h1
    hn_ref[1] = h2
    cn_ref[0] = c1
    cn_ref[1] = c2


def _pick_time_chunk(T, max_chunk=64):
    tc = min(T, max_chunk)
    while T % tc:
        tc -= 1
    return tc


def battery_lstm_forward(x, params, hidden=None, time_chunk=None):
    """x: [B, T, INPUT_SIZE] float32. Returns dict matching BatteryLSTM.forward."""
    B, T, _ = x.shape
    H = HIDDEN
    Bp = ((B + 7) // 8) * 8          # pad batch (sublane dim) to a multiple of 8
    Tc = _pick_time_chunk(T) if time_chunk is None else time_chunk
    assert T % Tc == 0, "time_chunk must divide T"
    group = 4 if Tc % 4 == 0 else (2 if Tc % 2 == 0 else 1)

    if hidden is None:
        h0 = jnp.zeros((NUM_LAYERS, Bp, H), jnp.float32)
        c0 = jnp.zeros((NUM_LAYERS, Bp, H), jnp.float32)
    else:
        h0, c0 = hidden
        h0 = jnp.pad(h0, ((0, 0), (0, Bp - B), (0, 0)))
        c0 = jnp.pad(c0, ((0, 0), (0, Bp - B), (0, 0)))

    x_tbi = jnp.pad(jnp.transpose(x, (1, 0, 2)),
                    ((0, 0), (0, Bp - B), (0, 0)))                      # [T,Bp,I]
    # Hoist the layer-1 input projection: one MXU-efficient [T*B, I]@[I, 4H].
    pre1 = (jnp.einsum("tbi,ig->tbg", x_tbi, params["wih1"])
            + params["b1"]).astype(jnp.float32)                         # [T,Bp,4H]
    # Block-structured combined recurrent weight (2H, 8H):
    #   [[W_hh1, W_ih2],
    #    [  0  , W_hh2]]
    wcomb = jnp.concatenate(
        [jnp.concatenate([params["whh1"], params["wih2"]], axis=1),
         jnp.concatenate([jnp.zeros((H, 4 * H), jnp.float32),
                          params["whh2"]], axis=1)],
        axis=0)

    full = lambda a: pl.BlockSpec(a.shape, lambda c: (0,) * a.ndim)

    h2_packed, hn, cn = pl.pallas_call(
        functools.partial(_lstm_recurrence_kernel, group=group),
        out_shape=(
            jax.ShapeDtypeStruct((T // group, Bp, group * H), jnp.float32),
            jax.ShapeDtypeStruct((NUM_LAYERS, Bp, H), jnp.float32),
            jax.ShapeDtypeStruct((NUM_LAYERS, Bp, H), jnp.float32),
        ),
        grid_spec=pltpu.PrefetchScalarGridSpec(
            num_scalar_prefetch=0,
            grid=(T // Tc,),
            in_specs=[
                pl.BlockSpec((Tc, Bp, 4 * H), lambda c: (c, 0, 0)),
                full(wcomb), full(params["b2"]),
                pl.BlockSpec((NUM_LAYERS, Bp, H), lambda c: (0, 0, 0)),
                pl.BlockSpec((NUM_LAYERS, Bp, H), lambda c: (0, 0, 0)),
            ],
            out_specs=[
                pl.BlockSpec((Tc // group, Bp, group * H), lambda c: (c, 0, 0)),
                pl.BlockSpec((NUM_LAYERS, Bp, H), lambda c: (0, 0, 0)),
                pl.BlockSpec((NUM_LAYERS, Bp, H), lambda c: (0, 0, 0)),
            ],
        ),
        # Time axis carries state -> sequential.  (A batch-parallel leading
        # grid axis for v7x's 2 TCs only pays once B >= 2 sublane tiles.)
        compiler_params=pltpu.CompilerParams(
            dimension_semantics=("arbitrary",)),
    )(pre1, wcomb, params["b2"], h0, c0)

    # Un-pack the lane-dense slab (T//g, Bp, g*H) -> [B, T, H]; drop padding.
    h2_bt = (h2_packed.reshape(T // group, Bp, group, H)
             .transpose(1, 0, 2, 3).reshape(Bp, T, H))[:B]
    hn, cn = hn[:, :B], cn[:, :B]

    # Deferred heads: one fused [B*T, H] @ [H, 5] matmul + per-head activation.
    y = h2_bt @ params["wh"] + params["bh"]                             # [B,T,5]
    return {
        "soc": jax.nn.sigmoid(y[..., 0:1]),
        "voltage": y[..., 1:2],
        "temperature": y[..., 2:3],
        "soh": jax.nn.sigmoid(y[..., 3:4]),
        "rul": jax.nn.relu(y[..., 4:5]),
        "hidden": (hn, cn),
    }


def init_params(key):
    """Deterministic synthetic parameters (shapes follow nn.LSTM / nn.Linear)."""
    H, I = HIDDEN, INPUT_SIZE
    ks = jax.random.split(key, 16)
    s = 1.0 / jnp.sqrt(H)
    u = lambda k, shape: jax.random.uniform(k, shape, jnp.float32, -s, s)
    # LSTM weights stored pre-transposed for right-multiplication: [in, 4H]
    return {
        "wih1": u(ks[0], (I, 4 * H)),
        "whh1": u(ks[1], (H, 4 * H)),
        "b1":   u(ks[2], (1, 4 * H)) + u(ks[3], (1, 4 * H)),   # b_ih + b_hh
        "wih2": u(ks[4], (H, 4 * H)),
        "whh2": u(ks[5], (H, 4 * H)),
        "b2":   u(ks[6], (1, 4 * H)) + u(ks[7], (1, 4 * H)),
        # 5 fused heads: columns = (soc, voltage, temperature, soh, rul)
        "wh":   u(ks[8], (H, NUM_HEADS)),
        "bh":   u(ks[9], (1, NUM_HEADS)),
    }


def reference_forward(x, p, hidden=None):
    """Pure-JAX reference (lax.scan) for a correctness check."""
    H = HIDDEN
    B = x.shape[0]
    if hidden is None:
        z = jnp.zeros((B, H), jnp.float32)
        h1 = c1 = h2 = c2 = z
    else:
        h0, c0 = hidden
        h1, h2, c1, c2 = h0[0], h0[1], c0[0], c0[1]

    def cell(inp, h, c, wih, whh, b):
        g = inp @ wih + h @ whh + b
        i = jax.nn.sigmoid(g[:, :H]); f = jax.nn.sigmoid(g[:, H:2 * H])
        gg = jnp.tanh(g[:, 2 * H:3 * H]); o = jax.nn.sigmoid(g[:, 3 * H:])
        c = f * c + i * gg
        h = o * jnp.tanh(c)
        return h, c

    def step(carry, x_t):
        h1, c1, h2, c2 = carry
        h1, c1 = cell(x_t, h1, c1, p["wih1"], p["whh1"], p["b1"])
        h2, c2 = cell(h1, h2, c2, p["wih2"], p["whh2"], p["b2"])
        return (h1, c1, h2, c2), h2 @ p["wh"] + p["bh"]

    (h1, c1, h2, c2), ys = lax.scan(step, (h1, c1, h2, c2),
                                    jnp.transpose(x, (1, 0, 2)))
    y = jnp.transpose(ys, (1, 0, 2))
    col = jnp.arange(NUM_HEADS)[None, None, :]
    y = jnp.where((col == 0) | (col == 3), jax.nn.sigmoid(y),
                  jnp.where(col == 4, jnp.maximum(y, 0.0), y))
    return y, jnp.stack([h1, h2]), jnp.stack([c1, c2])


def _stack_heads(out):
    return jnp.concatenate([out["soc"], out["voltage"], out["temperature"],
                            out["soh"], out["rul"]], axis=-1)


if __name__ == "__main__":
    key = jax.random.PRNGKey(0)
    k_param, k_x, k_x2, k_h, k_c = jax.random.split(key, 5)
    params = init_params(k_param)

    # Case 1: single time chunk (grid=(1,)), zero initial state.
    B, T = 2, 8
    x = jax.random.normal(k_x, (B, T, INPUT_SIZE), jnp.float32)
    out = jax.block_until_ready(battery_lstm_forward(x, params))
    y_ref, hn_ref, cn_ref = reference_forward(x, params)
    assert jnp.allclose(_stack_heads(out), y_ref, atol=1e-4), "head mismatch"
    assert jnp.allclose(out["hidden"][0], hn_ref, atol=1e-4), "h_n mismatch"
    assert jnp.allclose(out["hidden"][1], cn_ref, atol=1e-4), "c_n mismatch"

    # Case 2: multiple chunks (grid=(2,)) with a nonzero initial state to
    # exercise the cross-chunk state carry and the boundary rec1 recompute.
    T2 = 16
    x2 = jax.random.normal(k_x2, (B, T2, INPUT_SIZE), jnp.float32)
    h0 = 0.1 * jax.random.normal(k_h, (NUM_LAYERS, B, HIDDEN), jnp.float32)
    c0 = 0.1 * jax.random.normal(k_c, (NUM_LAYERS, B, HIDDEN), jnp.float32)
    out2 = jax.block_until_ready(
        battery_lstm_forward(x2, params, hidden=(h0, c0), time_chunk=8))
    y_ref2, hn_ref2, cn_ref2 = reference_forward(x2, params, hidden=(h0, c0))
    assert jnp.allclose(_stack_heads(out2), y_ref2, atol=1e-4), "head mismatch (chunked)"
    assert jnp.allclose(out2["hidden"][0], hn_ref2, atol=1e-4), "h_n mismatch (chunked)"
    assert jnp.allclose(out2["hidden"][1], cn_ref2, atol=1e-4), "c_n mismatch (chunked)"

    print("KERNEL_OK")
</pallas_src>

<mosaic_0001>
module attributes {stable_mosaic.version = 11 : i64} {
  func.func @_lstm_recurrence_kernel(%arg0: i32, %arg1: memref<8x8x128xf32, #tpu.memory_space<vmem>>, %arg2: memref<64x256xf32, #tpu.memory_space<vmem>>, %arg3: memref<1x128xf32, #tpu.memory_space<vmem>>, %arg4: memref<2x8x32xf32, #tpu.memory_space<vmem>>, %arg5: memref<2x8x32xf32, #tpu.memory_space<vmem>>, %arg6: memref<2x8x128xf32, #tpu.memory_space<vmem>>, %arg7: memref<2x8x32xf32, #tpu.memory_space<vmem>>, %arg8: memref<2x8x32xf32, #tpu.memory_space<vmem>>) attributes {dimension_semantics = [#tpu.dimension_semantics<arbitrary>], iteration_bounds = array<i64: 1>, scalar_prefetch = 0 : i64, scratch_operands = 0 : i64, tpu.core_type = #tpu.core_type<tc>, window_params = [{transform_indices = @transform_0, window_bounds = array<i64: 8, 8, 128>}, {pipeline_mode = #tpu.pipeline_mode<synchronous>, transform_indices = @transform_1, window_bounds = array<i64: 64, 256>}, {pipeline_mode = #tpu.pipeline_mode<synchronous>, transform_indices = @transform_2, window_bounds = array<i64: 1, 128>}, {pipeline_mode = #tpu.pipeline_mode<synchronous>, transform_indices = @transform_3, window_bounds = array<i64: 2, 8, 32>}, {pipeline_mode = #tpu.pipeline_mode<synchronous>, transform_indices = @transform_4, window_bounds = array<i64: 2, 8, 32>}, {transform_indices = @transform_5, window_bounds = array<i64: 2, 8, 128>}, {pipeline_mode = #tpu.pipeline_mode<synchronous>, transform_indices = @transform_6, window_bounds = array<i64: 2, 8, 32>}, {pipeline_mode = #tpu.pipeline_mode<synchronous>, transform_indices = @transform_7, window_bounds = array<i64: 2, 8, 32>}]} {
    %c0_i32 = arith.constant 0 : i32
    %0 = arith.cmpi eq, %arg0, %c0_i32 : i32
    %1 = arith.extui %0 : i1 to i32
    %c0_i32_0 = arith.constant 0 : i32
    %2 = arith.cmpi ne, %1, %c0_i32_0 : i32
    scf.if %2 {
      %c0_86 = arith.constant 0 : index
      %c0_87 = arith.constant 0 : index
      %c0_88 = arith.constant 0 : index
      %367 = vector.load %arg4[%c0_86, %c0_87, %c0_88] : memref<2x8x32xf32, #tpu.memory_space<vmem>>, vector<2x8x32xf32>
      %c0_89 = arith.constant 0 : index
      %c0_90 = arith.constant 0 : index
      %c0_91 = arith.constant 0 : index
      %368 = vector.load %arg7[%c0_89, %c0_90, %c0_91] : memref<2x8x32xf32, #tpu.memory_space<vmem>>, vector<2x8x32xf32>
      tpu.vector_store %arg7[%c0_89, %c0_90, %c0_91], %367 {strides = array<i32>} : memref<2x8x32xf32, #tpu.memory_space<vmem>>, vector<2x8x32xf32>,
      %c0_92 = arith.constant 0 : index
      %c0_93 = arith.constant 0 : index
      %c0_94 = arith.constant 0 : index
      %369 = vector.load %arg5[%c0_92, %c0_93, %c0_94] : memref<2x8x32xf32, #tpu.memory_space<vmem>>, vector<2x8x32xf32>
      %c0_95 = arith.constant 0 : index
      %c0_96 = arith.constant 0 : index
      %c0_97 = arith.constant 0 : index
      %370 = vector.load %arg8[%c0_95, %c0_96, %c0_97] : memref<2x8x32xf32, #tpu.memory_space<vmem>>, vector<2x8x32xf32>
      tpu.vector_store %arg8[%c0_95, %c0_96, %c0_97], %369 {strides = array<i32>} : memref<2x8x32xf32, #tpu.memory_space<vmem>>, vector<2x8x32xf32>,
    } else {
    }
    %c0 = arith.constant 0 : index
    %c0_1 = arith.constant 0 : index
    %3 = vector.load %arg2[%c0, %c0_1] : memref<64x256xf32, #tpu.memory_space<vmem>>, vector<64x256xf32>
    %c0_2 = arith.constant 0 : index
    %c0_3 = arith.constant 0 : index
    %4 = vector.load %arg3[%c0_2, %c0_3] : memref<1x128xf32, #tpu.memory_space<vmem>>, vector<1x128xf32>
    %5 = vector.shape_cast %4 : vector<1x128xf32> to vector<1x128xf32>
    %6 = vector.broadcast %5 : vector<1x128xf32> to vector<8x128xf32>
    %c0_4 = arith.constant 0 : index
    %c0_5 = arith.constant 0 : index
    %c0_6 = arith.constant 0 : index
    %7 = vector.load %arg7[%c0_4, %c0_5, %c0_6] : memref<2x8x32xf32, #tpu.memory_space<vmem>>, vector<1x8x32xf32>
    %8 = vector.shape_cast %7 : vector<1x8x32xf32> to vector<8x32xf32>
    %c1 = arith.constant 1 : index
    %c0_7 = arith.constant 0 : index
    %c0_8 = arith.constant 0 : index
    %9 = vector.load %arg7[%c1, %c0_7, %c0_8] : memref<2x8x32xf32, #tpu.memory_space<vmem>>, vector<1x8x32xf32>
    %10 = vector.shape_cast %9 : vector<1x8x32xf32> to vector<8x32xf32>
    %c0_9 = arith.constant 0 : index
    %c0_10 = arith.constant 0 : index
    %c0_11 = arith.constant 0 : index
    %11 = vector.load %arg8[%c0_9, %c0_10, %c0_11] : memref<2x8x32xf32, #tpu.memory_space<vmem>>, vector<1x8x32xf32>
    %12 = vector.shape_cast %11 : vector<1x8x32xf32> to vector<8x32xf32>
    %c1_12 = arith.constant 1 : index
    %c0_13 = arith.constant 0 : index
    %c0_14 = arith.constant 0 : index
    %13 = vector.load %arg8[%c1_12, %c0_13, %c0_14] : memref<2x8x32xf32, #tpu.memory_space<vmem>>, vector<1x8x32xf32>
    %14 = vector.shape_cast %13 : vector<1x8x32xf32> to vector<8x32xf32>
    %15 = vector.extract_strided_slice %3 {offsets = [0, 0], sizes = [32, 128], strides = [1, 1]} : vector<64x256xf32> to vector<32x128xf32>
    %cst = arith.constant dense<0.000000e+00> : vector<8x128xf32>
    %16 = tpu.matmul %8, %15, %cst {dimension_numbers = #tpu.dot_dimension_numbers<[1], [0], [0], [1], [0, 0, 1, 1], [], []>} : vector<8x32xf32>, vector<32x128xf32>, vector<8x128xf32> -> vector<8x128xf32>
    %c0_i32_15 = arith.constant 0 : i32
    %c4_i32 = arith.constant 4 : i32
    %17 = arith.muli %c0_i32_15, %c4_i32 : i32
    %c0_i32_16 = arith.constant 0 : i32
    %18 = arith.addi %17, %c0_i32_16 : i32
    %19 = arith.index_cast %18 : i32 to index
    %c0_17 = arith.constant 0 : index
    %c0_18 = arith.constant 0 : index
    %20 = vector.load %arg1[%19, %c0_17, %c0_18] : memref<8x8x128xf32, #tpu.memory_space<vmem>>, vector<1x8x128xf32>
    %21 = vector.shape_cast %20 : vector<1x8x128xf32> to vector<8x128xf32>
    %22 = arith.addf %21, %16 : vector<8x128xf32>
    %23 = arith.negf %22 : vector<8x128xf32>
    %24 = math.exp %23 : vector<8x128xf32>
    %cst_19 = arith.constant 1.000000e+00 : f32
    %25 = vector.broadcast %cst_19 : f32 to vector<8x128xf32>
    %26 = arith.addf %25, %24 : vector<8x128xf32>
    %27 = arith.divf %25, %26 : vector<8x128xf32>
    %28 = math.tanh %22 : vector<8x128xf32>
    %29 = vector.extract_strided_slice %27 {offsets = [0, 0], sizes = [8, 32], strides = [1, 1]} : vector<8x128xf32> to vector<8x32xf32>
    %30 = vector.extract_strided_slice %27 {offsets = [0, 32], sizes = [8, 32], strides = [1, 1]} : vector<8x128xf32> to vector<8x32xf32>
    %31 = vector.extract_strided_slice %28 {offsets = [0, 64], sizes = [8, 32], strides = [1, 1]} : vector<8x128xf32> to vector<8x32xf32>
    %32 = vector.extract_strided_slice %27 {offsets = [0, 96], sizes = [8, 32], strides = [1, 1]} : vector<8x128xf32> to vector<8x32xf32>
    %33 = arith.mulf %30, %12 : vector<8x32xf32>
    %34 = arith.mulf %29, %31 : vector<8x32xf32>
    %35 = arith.addf %33, %34 : vector<8x32xf32>
    %36 = math.tanh %35 : vector<8x32xf32>
    %37 = arith.mulf %32, %36 : vector<8x32xf32>
    %38 = tpu.concatenate %37, %10 in 1 : vector<8x32xf32>, vector<8x32xf32> -> vector<8x64xf32>
    %cst_20 = arith.constant dense<0.000000e+00> : vector<8x256xf32>
    %39 = tpu.matmul %38, %3, %cst_20 {dimension_numbers = #tpu.dot_dimension_numbers<[1], [0], [0], [1], [0, 0, 1, 1], [], []>} : vector<8x64xf32>, vector<64x256xf32>, vector<8x256xf32> -> vector<8x256xf32>
    %40 = vector.extract_strided_slice %39 {offsets = [0, 0], sizes = [8, 128], strides = [1, 1]} : vector<8x256xf32> to vector<8x128xf32>
    %41 = vector.extract_strided_slice %39 {offsets = [0, 128], sizes = [8, 128], strides = [1, 1]} : vector<8x256xf32> to vector<8x128xf32>
    %42 = arith.addf %41, %6 : vector<8x128xf32>
    %43 = arith.negf %42 : vector<8x128xf32>
    %44 = math.exp %43 : vector<8x128xf32>
    %cst_21 = arith.constant 1.000000e+00 : f32
    %45 = vector.broadcast %cst_21 : f32 to vector<8x128xf32>
    %46 = arith.addf %45, %44 : vector<8x128xf32>
    %47 = arith.divf %45, %46 : vector<8x128xf32>
    %48 = math.tanh %42 : vector<8x128xf32>
    %49 = vector.extract_strided_slice %47 {offsets = [0, 0], sizes = [8, 32], strides = [1, 1]} : vector<8x128xf32> to vector<8x32xf32>
    %50 = vector.extract_strided_slice %47 {offsets = [0, 32], sizes = [8, 32], strides = [1, 1]} : vector<8x128xf32> to vector<8x32xf32>
    %51 = vector.extract_strided_slice %48 {offsets = [0, 64], sizes = [8, 32], strides = [1, 1]} : vector<8x128xf32> to vector<8x32xf32>
    %52 = vector.extract_strided_slice %47 {offsets = [0, 96], sizes = [8, 32], strides = [1, 1]} : vector<8x128xf32> to vector<8x32xf32>
    %53 = arith.mulf %50, %14 : vector<8x32xf32>
    %54 = arith.mulf %49, %51 : vector<8x32xf32>
    %55 = arith.addf %53, %54 : vector<8x32xf32>
    %56 = math.tanh %55 : vector<8x32xf32>
    %57 = arith.mulf %52, %56 : vector<8x32xf32>
    %c4_i32_22 = arith.constant 4 : i32
    %58 = arith.muli %c0_i32_15, %c4_i32_22 : i32
    %c1_i32 = arith.constant 1 : i32
    %59 = arith.addi %58, %c1_i32 : i32
    %60 = arith.index_cast %59 : i32 to index
    %c0_23 = arith.constant 0 : index
    %c0_24 = arith.constant 0 : index
    %61 = vector.load %arg1[%60, %c0_23, %c0_24] : memref<8x8x128xf32, #tpu.memory_space<vmem>>, vector<1x8x128xf32>
    %62 = vector.shape_cast %61 : vector<1x8x128xf32> to vector<8x128xf32>
    %63 = arith.addf %62, %40 : vector<8x128xf32>
    %64 = arith.negf %63 : vector<8x128xf32>
    %65 = math.exp %64 : vector<8x128xf32>
    %cst_25 = arith.constant 1.000000e+00 : f32
    %66 = vector.broadcast %cst_25 : f32 to vector<8x128xf32>
    %67 = arith.addf %66, %65 : vector<8x128xf32>
    %68 = arith.divf %66, %67 : vector<8x128xf32>
    %69 = math.tanh %63 : vector<8x128xf32>
    %70 = vector.extract_strided_slice %68 {offsets = [0, 0], sizes = [8, 32], strides = [1, 1]} : vector<8x128xf32> to vector<8x32xf32>
    %71 = vector.extract_strided_slice %68 {offsets = [0, 32], sizes = [8, 32], strides = [1, 1]} : vector<8x128xf32> to vector<8x32xf32>
    %72 = vector.extract_strided_slice %69 {offsets = [0, 64], sizes = [8, 32], strides = [1, 1]} : vector<8x128xf32> to vector<8x32xf32>
    %73 = vector.extract_strided_slice %68 {offsets = [0, 96], sizes = [8, 32], strides = [1, 1]} : vector<8x128xf32> to vector<8x32xf32>
    %74 = arith.mulf %71, %35 : vector<8x32xf32>
    %75 = arith.mulf %70, %72 : vector<8x32xf32>
    %76 = arith.addf %74, %75 : vector<8x32xf32>
    %77 = math.tanh %76 : vector<8x32xf32>
    %78 = arith.mulf %73, %77 : vector<8x32xf32>
    %79 = tpu.concatenate %78, %57 in 1 : vector<8x32xf32>, vector<8x32xf32> -> vector<8x64xf32>
    %cst_26 = arith.constant dense<0.000000e+00> : vector<8x256xf32>
    %80 = tpu.matmul %79, %3, %cst_26 {dimension_numbers = #tpu.dot_dimension_numbers<[1], [0], [0], [1], [0, 0, 1, 1], [], []>} : vector<8x64xf32>, vector<64x256xf32>, vector<8x256xf32> -> vector<8x256xf32>
    %81 = vector.extract_strided_slice %80 {offsets = [0, 0], sizes = [8, 128], strides = [1, 1]} : vector<8x256xf32> to vector<8x128xf32>
    %82 = vector.extract_strided_slice %80 {offsets = [0, 128], sizes = [8, 128], strides = [1, 1]} : vector<8x256xf32> to vector<8x128xf32>
    %83 = arith.addf %82, %6 : vector<8x128xf32>
    %84 = arith.negf %83 : vector<8x128xf32>
    %85 = math.exp %84 : vector<8x128xf32>
    %cst_27 = arith.constant 1.000000e+00 : f32
    %86 = vector.broadcast %cst_27 : f32 to vector<8x128xf32>
    %87 = arith.addf %86, %85 : vector<8x128xf32>
    %88 = arith.divf %86, %87 : vector<8x128xf32>
    %89 = math.tanh %83 : vector<8x128xf32>
    %90 = vector.extract_strided_slice %88 {offsets = [0, 0], sizes = [8, 32], strides = [1, 1]} : vector<8x128xf32> to vector<8x32xf32>
    %91 = vector.extract_strided_slice %88 {offsets = [0, 32], sizes = [8, 32], strides = [1, 1]} : vector<8x128xf32> to vector<8x32xf32>
    %92 = vector.extract_strided_slice %89 {offsets = [0, 64], sizes = [8, 32], strides = [1, 1]} : vector<8x128xf32> to vector<8x32xf32>
    %93 = vector.extract_strided_slice %88 {offsets = [0, 96], sizes = [8, 32], strides = [1, 1]} : vector<8x128xf32> to vector<8x32xf32>
    %94 = arith.mulf %91, %55 : vector<8x32xf32>
    %95 = arith.mulf %90, %92 : vector<8x32xf32>
    %96 = arith.addf %94, %95 : vector<8x32xf32>
    %97 = math.tanh %96 : vector<8x32xf32>
    %98 = arith.mulf %93, %97 : vector<8x32xf32>
    %c4_i32_28 = arith.constant 4 : i32
    %99 = arith.muli %c0_i32_15, %c4_i32_28 : i32
    %c2_i32 = arith.constant 2 : i32
    %100 = arith.addi %99, %c2_i32 : i32
    %101 = arith.index_cast %100 : i32 to index
    %c0_29 = arith.constant 0 : index
    %c0_30 = arith.constant 0 : index
    %102 = vector.load %arg1[%101, %c0_29, %c0_30] : memref<8x8x128xf32, #tpu.memory_space<vmem>>, vector<1x8x128xf32>
    %103 = vector.shape_cast %102 : vector<1x8x128xf32> to vector<8x128xf32>
    %104 = arith.addf %103, %81 : vector<8x128xf32>
    %105 = arith.negf %104 : vector<8x128xf32>
    %106 = math.exp %105 : vector<8x128xf32>
    %cst_31 = arith.constant 1.000000e+00 : f32
    %107 = vector.broadcast %cst_31 : f32 to vector<8x128xf32>
    %108 = arith.addf %107, %106 : vector<8x128xf32>
    %109 = arith.divf %107, %108 : vector<8x128xf32>
    %110 = math.tanh %104 : vector<8x128xf32>
    %111 = vector.extract_strided_slice %109 {offsets = [0, 0], sizes = [8, 32], strides = [1, 1]} : vector<8x128xf32> to vector<8x32xf32>
    %112 = vector.extract_strided_slice %109 {offsets = [0, 32], sizes = [8, 32], strides = [1, 1]} : vector<8x128xf32> to vector<8x32xf32>
    %113 = vector.extract_strided_slice %110 {offsets = [0, 64], sizes = [8, 32], strides = [1, 1]} : vector<8x128xf32> to vector<8x32xf32>
    %114 = vector.extract_strided_slice %109 {offsets = [0, 96], sizes = [8, 32], strides = [1, 1]} : vector<8x128xf32> to vector<8x32xf32>
    %115 = arith.mulf %112, %76 : vector<8x32xf32>
    %116 = arith.mulf %111, %113 : vector<8x32xf32>
    %117 = arith.addf %115, %116 : vector<8x32xf32>
    %118 = math.tanh %117 : vector<8x32xf32>
    %119 = arith.mulf %114, %118 : vector<8x32xf32>
    %120 = tpu.concatenate %119, %98 in 1 : vector<8x32xf32>, vector<8x32xf32> -> vector<8x64xf32>
    %cst_32 = arith.constant dense<0.000000e+00> : vector<8x256xf32>
    %121 = tpu.matmul %120, %3, %cst_32 {dimension_numbers = #tpu.dot_dimension_numbers<[1], [0], [0], [1], [0, 0, 1, 1], [], []>} : vector<8x64xf32>, vector<64x256xf32>, vector<8x256xf32> -> vector<8x256xf32>
    %122 = vector.extract_strided_slice %121 {offsets = [0, 0], sizes = [8, 128], strides = [1, 1]} : vector<8x256xf32> to vector<8x128xf32>
    %123 = vector.extract_strided_slice %121 {offsets = [0, 128], sizes = [8, 128], strides = [1, 1]} : vector<8x256xf32> to vector<8x128xf32>
    %124 = arith.addf %123, %6 : vector<8x128xf32>
    %125 = arith.negf %124 : vector<8x128xf32>
    %126 = math.exp %125 : vector<8x128xf32>
    %cst_33 = arith.constant 1.000000e+00 : f32
    %127 = vector.broadcast %cst_33 : f32 to vector<8x128xf32>
    %128 = arith.addf %127, %126 : vector<8x128xf32>
    %129 = arith.divf %127, %128 : vector<8x128xf32>
    %130 = math.tanh %124 : vector<8x128xf32>
    %131 = vector.extract_strided_slice %129 {offsets = [0, 0], sizes = [8, 32], strides = [1, 1]} : vector<8x128xf32> to vector<8x32xf32>
    %132 = vector.extract_strided_slice %129 {offsets = [0, 32], sizes = [8, 32], strides = [1, 1]} : vector<8x128xf32> to vector<8x32xf32>
    %133 = vector.extract_strided_slice %130 {offsets = [0, 64], sizes = [8, 32], strides = [1, 1]} : vector<8x128xf32> to vector<8x32xf32>
    %134 = vector.extract_strided_slice %129 {offsets = [0, 96], sizes = [8, 32], strides = [1, 1]} : vector<8x128xf32> to vector<8x32xf32>
    %135 = arith.mulf %132, %96 : vector<8x32xf32>
    %136 = arith.mulf %131, %133 : vector<8x32xf32>
    %137 = arith.addf %135, %136 : vector<8x32xf32>
    %138 = math.tanh %137 : vector<8x32xf32>
    %139 = arith.mulf %134, %138 : vector<8x32xf32>
    %c4_i32_34 = arith.constant 4 : i32
    %140 = arith.muli %c0_i32_15, %c4_i32_34 : i32
    %c3_i32 = arith.constant 3 : i32
    %141 = arith.addi %140, %c3_i32 : i32
    %142 = arith.index_cast %141 : i32 to index
    %c0_35 = arith.constant 0 : index
    %c0_36 = arith.constant 0 : index
    %143 = vector.load %arg1[%142, %c0_35, %c0_36] : memref<8x8x128xf32, #tpu.memory_space<vmem>>, vector<1x8x128xf32>
    %144 = vector.shape_cast %143 : vector<1x8x128xf32> to vector<8x128xf32>
    %145 = arith.addf %144, %122 : vector<8x128xf32>
    %146 = arith.negf %145 : vector<8x128xf32>
    %147 = math.exp %146 : vector<8x128xf32>
    %cst_37 = arith.constant 1.000000e+00 : f32
    %148 = vector.broadcast %cst_37 : f32 to vector<8x128xf32>
    %149 = arith.addf %148, %147 : vector<8x128xf32>
    %150 = arith.divf %148, %149 : vector<8x128xf32>
    %151 = math.tanh %145 : vector<8x128xf32>
    %152 = vector.extract_strided_slice %150 {offsets = [0, 0], sizes = [8, 32], strides = [1, 1]} : vector<8x128xf32> to vector<8x32xf32>
    %153 = vector.extract_strided_slice %150 {offsets = [0, 32], sizes = [8, 32], strides = [1, 1]} : vector<8x128xf32> to vector<8x32xf32>
    %154 = vector.extract_strided_slice %151 {offsets = [0, 64], sizes = [8, 32], strides = [1, 1]} : vector<8x128xf32> to vector<8x32xf32>
    %155 = vector.extract_strided_slice %150 {offsets = [0, 96], sizes = [8, 32], strides = [1, 1]} : vector<8x128xf32> to vector<8x32xf32>
    %156 = arith.mulf %153, %117 : vector<8x32xf32>
    %157 = arith.mulf %152, %154 : vector<8x32xf32>
    %158 = arith.addf %156, %157 : vector<8x32xf32>
    %159 = math.tanh %158 : vector<8x32xf32>
    %160 = arith.mulf %155, %159 : vector<8x32xf32>
    %161 = tpu.concatenate %160, %139 in 1 : vector<8x32xf32>, vector<8x32xf32> -> vector<8x64xf32>
    %cst_38 = arith.constant dense<0.000000e+00> : vector<8x256xf32>
    %162 = tpu.matmul %161, %3, %cst_38 {dimension_numbers = #tpu.dot_dimension_numbers<[1], [0], [0], [1], [0, 0, 1, 1], [], []>} : vector<8x64xf32>, vector<64x256xf32>, vector<8x256xf32> -> vector<8x256xf32>
    %163 = vector.extract_strided_slice %162 {offsets = [0, 0], sizes = [8, 128], strides = [1, 1]} : vector<8x256xf32> to vector<8x128xf32>
    %164 = vector.extract_strided_slice %162 {offsets = [0, 128], sizes = [8, 128], strides = [1, 1]} : vector<8x256xf32> to vector<8x128xf32>
    %165 = arith.addf %164, %6 : vector<8x128xf32>
    %166 = arith.negf %165 : vector<8x128xf32>
    %167 = math.exp %166 : vector<8x128xf32>
    %cst_39 = arith.constant 1.000000e+00 : f32
    %168 = vector.broadcast %cst_39 : f32 to vector<8x128xf32>
    %169 = arith.addf %168, %167 : vector<8x128xf32>
    %170 = arith.divf %168, %169 : vector<8x128xf32>
    %171 = math.tanh %165 : vector<8x128xf32>
    %172 = vector.extract_strided_slice %170 {offsets = [0, 0], sizes = [8, 32], strides = [1, 1]} : vector<8x128xf32> to vector<8x32xf32>
    %173 = vector.extract_strided_slice %170 {offsets = [0, 32], sizes = [8, 32], strides = [1, 1]} : vector<8x128xf32> to vector<8x32xf32>
    %174 = vector.extract_strided_slice %171 {offsets = [0, 64], sizes = [8, 32], strides = [1, 1]} : vector<8x128xf32> to vector<8x32xf32>
    %175 = vector.extract_strided_slice %170 {offsets = [0, 96], sizes = [8, 32], strides = [1, 1]} : vector<8x128xf32> to vector<8x32xf32>
    %176 = arith.mulf %173, %137 : vector<8x32xf32>
    %177 = arith.mulf %172, %174 : vector<8x32xf32>
    %178 = arith.addf %176, %177 : vector<8x32xf32>
    %179 = math.tanh %178 : vector<8x32xf32>
    %180 = arith.mulf %175, %179 : vector<8x32xf32>
    %181 = tpu.concatenate %57, %98, %139, %180 in 1 : vector<8x32xf32>, vector<8x32xf32>, vector<8x32xf32>, vector<8x32xf32> -> vector<8x128xf32>
    %182 = arith.index_cast %c0_i32_15 : i32 to index
    %c0_40 = arith.constant 0 : index
    %c0_41 = arith.constant 0 : index
    %183 = vector.load %arg6[%182, %c0_40, %c0_41] : memref<2x8x128xf32, #tpu.memory_space<vmem>>, vector<1x8x128xf32>
    %184 = vector.shape_cast %183 : vector<1x8x128xf32> to vector<8x128xf32>
    %185 = vector.shape_cast %181 : vector<8x128xf32> to vector<1x8x128xf32>
    tpu.vector_store %arg6[%182, %c0_40, %c0_41], %185 {strides = array<i32>} : memref<2x8x128xf32, #tpu.memory_space<vmem>>, vector<1x8x128xf32>,
    %c1_i32_42 = arith.constant 1 : i32
    %c4_i32_43 = arith.constant 4 : i32
    %186 = arith.muli %c1_i32_42, %c4_i32_43 : i32
    %c0_i32_44 = arith.constant 0 : i32
    %187 = arith.addi %186, %c0_i32_44 : i32
    %188 = arith.index_cast %187 : i32 to index
    %c0_45 = arith.constant 0 : index
    %c0_46 = arith.constant 0 : index
    %189 = vector.load %arg1[%188, %c0_45, %c0_46] : memref<8x8x128xf32, #tpu.memory_space<vmem>>, vector<1x8x128xf32>
    %190 = vector.shape_cast %189 : vector<1x8x128xf32> to vector<8x128xf32>
    %191 = arith.addf %190, %163 : vector<8x128xf32>
    %192 = arith.negf %191 : vector<8x128xf32>
    %193 = math.exp %192 : vector<8x128xf32>
    %cst_47 = arith.constant 1.000000e+00 : f32
    %194 = vector.broadcast %cst_47 : f32 to vector<8x128xf32>
    %195 = arith.addf %194, %193 : vector<8x128xf32>
    %196 = arith.divf %194, %195 : vector<8x128xf32>
    %197 = math.tanh %191 : vector<8x128xf32>
    %198 = vector.extract_strided_slice %196 {offsets = [0, 0], sizes = [8, 32], strides = [1, 1]} : vector<8x128xf32> to vector<8x32xf32>
    %199 = vector.extract_strided_slice %196 {offsets = [0, 32], sizes = [8, 32], strides = [1, 1]} : vector<8x128xf32> to vector<8x32xf32>
    %200 = vector.extract_strided_slice %197 {offsets = [0, 64], sizes = [8, 32], strides = [1, 1]} : vector<8x128xf32> to vector<8x32xf32>
    %201 = vector.extract_strided_slice %196 {offsets = [0, 96], sizes = [8, 32], strides = [1, 1]} : vector<8x128xf32> to vector<8x32xf32>
    %202 = arith.mulf %199, %158 : vector<8x32xf32>
    %203 = arith.mulf %198, %200 : vector<8x32xf32>
    %204 = arith.addf %202, %203 : vector<8x32xf32>
    %205 = math.tanh %204 : vector<8x32xf32>
    %206 = arith.mulf %201, %205 : vector<8x32xf32>
    %207 = tpu.concatenate %206, %180 in 1 : vector<8x32xf32>, vector<8x32xf32> -> vector<8x64xf32>
    %cst_48 = arith.constant dense<0.000000e+00> : vector<8x256xf32>
    %208 = tpu.matmul %207, %3, %cst_48 {dimension_numbers = #tpu.dot_dimension_numbers<[1], [0], [0], [1], [0, 0, 1, 1], [], []>} : vector<8x64xf32>, vector<64x256xf32>, vector<8x256xf32> -> vector<8x256xf32>
    %209 = vector.extract_strided_slice %208 {offsets = [0, 0], sizes = [8, 128], strides = [1, 1]} : vector<8x256xf32> to vector<8x128xf32>
    %210 = vector.extract_strided_slice %208 {offsets = [0, 128], sizes = [8, 128], strides = [1, 1]} : vector<8x256xf32> to vector<8x128xf32>
    %211 = arith.addf %210, %6 : vector<8x128xf32>
    %212 = arith.negf %211 : vector<8x128xf32>
    %213 = math.exp %212 : vector<8x128xf32>
    %cst_49 = arith.constant 1.000000e+00 : f32
    %214 = vector.broadcast %cst_49 : f32 to vector<8x128xf32>
    %215 = arith.addf %214, %213 : vector<8x128xf32>
    %216 = arith.divf %214, %215 : vector<8x128xf32>
    %217 = math.tanh %211 : vector<8x128xf32>
    %218 = vector.extract_strided_slice %216 {offsets = [0, 0], sizes = [8, 32], strides = [1, 1]} : vector<8x128xf32> to vector<8x32xf32>
    %219 = vector.extract_strided_slice %216 {offsets = [0, 32], sizes = [8, 32], strides = [1, 1]} : vector<8x128xf32> to vector<8x32xf32>
    %220 = vector.extract_strided_slice %217 {offsets = [0, 64], sizes = [8, 32], strides = [1, 1]} : vector<8x128xf32> to vector<8x32xf32>
    %221 = vector.extract_strided_slice %216 {offsets = [0, 96], sizes = [8, 32], strides = [1, 1]} : vector<8x128xf32> to vector<8x32xf32>
    %222 = arith.mulf %219, %178 : vector<8x32xf32>
    %223 = arith.mulf %218, %220 : vector<8x32xf32>
    %224 = arith.addf %222, %223 : vector<8x32xf32>
    %225 = math.tanh %224 : vector<8x32xf32>
    %226 = arith.mulf %221, %225 : vector<8x32xf32>
    %c4_i32_50 = arith.constant 4 : i32
    %227 = arith.muli %c1_i32_42, %c4_i32_50 : i32
    %c1_i32_51 = arith.constant 1 : i32
    %228 = arith.addi %227, %c1_i32_51 : i32
    %229 = arith.index_cast %228 : i32 to index
    %c0_52 = arith.constant 0 : index
    %c0_53 = arith.constant 0 : index
    %230 = vector.load %arg1[%229, %c0_52, %c0_53] : memref<8x8x128xf32, #tpu.memory_space<vmem>>, vector<1x8x128xf32>
    %231 = vector.shape_cast %230 : vector<1x8x128xf32> to vector<8x128xf32>
    %232 = arith.addf %231, %209 : vector<8x128xf32>
    %233 = arith.negf %232 : vector<8x128xf32>
    %234 = math.exp %233 : vector<8x128xf32>
    %cst_54 = arith.constant 1.000000e+00 : f32
    %235 = vector.broadcast %cst_54 : f32 to vector<8x128xf32>
    %236 = arith.addf %235, %234 : vector<8x128xf32>
    %237 = arith.divf %235, %236 : vector<8x128xf32>
    %238 = math.tanh %232 : vector<8x128xf32>
    %239 = vector.extract_strided_slice %237 {offsets = [0, 0], sizes = [8, 32], strides = [1, 1]} : vector<8x128xf32> to vector<8x32xf32>
    %240 = vector.extract_strided_slice %237 {offsets = [0, 32], sizes = [8, 32], strides = [1, 1]} : vector<8x128xf32> to vector<8x32xf32>
    %241 = vector.extract_strided_slice %238 {offsets = [0, 64], sizes = [8, 32], strides = [1, 1]} : vector<8x128xf32> to vector<8x32xf32>
    %242 = vector.extract_strided_slice %237 {offsets = [0, 96], sizes = [8, 32], strides = [1, 1]} : vector<8x128xf32> to vector<8x32xf32>
    %243 = arith.mulf %240, %204 : vector<8x32xf32>
    %244 = arith.mulf %239, %241 : vector<8x32xf32>
    %245 = arith.addf %243, %244 : vector<8x32xf32>
    %246 = math.tanh %245 : vector<8x32xf32>
    %247 = arith.mulf %242, %246 : vector<8x32xf32>
    %248 = tpu.concatenate %247, %226 in 1 : vector<8x32xf32>, vector<8x32xf32> -> vector<8x64xf32>
    %cst_55 = arith.constant dense<0.000000e+00> : vector<8x256xf32>
    %249 = tpu.matmul %248, %3, %cst_55 {dimension_numbers = #tpu.dot_dimension_numbers<[1], [0], [0], [1], [0, 0, 1, 1], [], []>} : vector<8x64xf32>, vector<64x256xf32>, vector<8x256xf32> -> vector<8x256xf32>
    %250 = vector.extract_strided_slice %249 {offsets = [0, 0], sizes = [8, 128], strides = [1, 1]} : vector<8x256xf32> to vector<8x128xf32>
    %251 = vector.extract_strided_slice %249 {offsets = [0, 128], sizes = [8, 128], strides = [1, 1]} : vector<8x256xf32> to vector<8x128xf32>
    %252 = arith.addf %251, %6 : vector<8x128xf32>
    %253 = arith.negf %252 : vector<8x128xf32>
    %254 = math.exp %253 : vector<8x128xf32>
    %cst_56 = arith.constant 1.000000e+00 : f32
    %255 = vector.broadcast %cst_56 : f32 to vector<8x128xf32>
    %256 = arith.addf %255, %254 : vector<8x128xf32>
    %257 = arith.divf %255, %256 : vector<8x128xf32>
    %258 = math.tanh %252 : vector<8x128xf32>
    %259 = vector.extract_strided_slice %257 {offsets = [0, 0], sizes = [8, 32], strides = [1, 1]} : vector<8x128xf32> to vector<8x32xf32>
    %260 = vector.extract_strided_slice %257 {offsets = [0, 32], sizes = [8, 32], strides = [1, 1]} : vector<8x128xf32> to vector<8x32xf32>
    %261 = vector.extract_strided_slice %258 {offsets = [0, 64], sizes = [8, 32], strides = [1, 1]} : vector<8x128xf32> to vector<8x32xf32>
    %262 = vector.extract_strided_slice %257 {offsets = [0, 96], sizes = [8, 32], strides = [1, 1]} : vector<8x128xf32> to vector<8x32xf32>
    %263 = arith.mulf %260, %224 : vector<8x32xf32>
    %264 = arith.mulf %259, %261 : vector<8x32xf32>
    %265 = arith.addf %263, %264 : vector<8x32xf32>
    %266 = math.tanh %265 : vector<8x32xf32>
    %267 = arith.mulf %262, %266 : vector<8x32xf32>
    %c4_i32_57 = arith.constant 4 : i32
    %268 = arith.muli %c1_i32_42, %c4_i32_57 : i32
    %c2_i32_58 = arith.constant 2 : i32
    %269 = arith.addi %268, %c2_i32_58 : i32
    %270 = arith.index_cast %269 : i32 to index
    %c0_59 = arith.constant 0 : index
    %c0_60 = arith.constant 0 : index
    %271 = vector.load %arg1[%270, %c0_59, %c0_60] : memref<8x8x128xf32, #tpu.memory_space<vmem>>, vector<1x8x128xf32>
    %272 = vector.shape_cast %271 : vector<1x8x128xf32> to vector<8x128xf32>
    %273 = arith.addf %272, %250 : vector<8x128xf32>
    %274 = arith.negf %273 : vector<8x128xf32>
    %275 = math.exp %274 : vector<8x128xf32>
    %cst_61 = arith.constant 1.000000e+00 : f32
    %276 = vector.broadcast %cst_61 : f32 to vector<8x128xf32>
    %277 = arith.addf %276, %275 : vector<8x128xf32>
    %278 = arith.divf %276, %277 : vector<8x128xf32>
    %279 = math.tanh %273 : vector<8x128xf32>
    %280 = vector.extract_strided_slice %278 {offsets = [0, 0], sizes = [8, 32], strides = [1, 1]} : vector<8x128xf32> to vector<8x32xf32>
    %281 = vector.extract_strided_slice %278 {offsets = [0, 32], sizes = [8, 32], strides = [1, 1]} : vector<8x128xf32> to vector<8x32xf32>
    %282 = vector.extract_strided_slice %279 {offsets = [0, 64], sizes = [8, 32], strides = [1, 1]} : vector<8x128xf32> to vector<8x32xf32>
    %283 = vector.extract_strided_slice %278 {offsets = [0, 96], sizes = [8, 32], strides = [1, 1]} : vector<8x128xf32> to vector<8x32xf32>
    %284 = arith.mulf %281, %245 : vector<8x32xf32>
    %285 = arith.mulf %280, %282 : vector<8x32xf32>
    %286 = arith.addf %284, %285 : vector<8x32xf32>
    %287 = math.tanh %286 : vector<8x32xf32>
    %288 = arith.mulf %283, %287 : vector<8x32xf32>
    %289 = tpu.concatenate %288, %267 in 1 : vector<8x32xf32>, vector<8x32xf32> -> vector<8x64xf32>
    %cst_62 = arith.constant dense<0.000000e+00> : vector<8x256xf32>
    %290 = tpu.matmul %289, %3, %cst_62 {dimension_numbers = #tpu.dot_dimension_numbers<[1], [0], [0], [1], [0, 0, 1, 1], [], []>} : vector<8x64xf32>, vector<64x256xf32>, vector<8x256xf32> -> vector<8x256xf32>
    %291 = vector.extract_strided_slice %290 {offsets = [0, 0], sizes = [8, 128], strides = [1, 1]} : vector<8x256xf32> to vector<8x128xf32>
    %292 = vector.extract_strided_slice %290 {offsets = [0, 128], sizes = [8, 128], strides = [1, 1]} : vector<8x256xf32> to vector<8x128xf32>
    %293 = arith.addf %292, %6 : vector<8x128xf32>
    %294 = arith.negf %293 : vector<8x128xf32>
    %295 = math.exp %294 : vector<8x128xf32>
    %cst_63 = arith.constant 1.000000e+00 : f32
    %296 = vector.broadcast %cst_63 : f32 to vector<8x128xf32>
    %297 = arith.addf %296, %295 : vector<8x128xf32>
    %298 = arith.divf %296, %297 : vector<8x128xf32>
    %299 = math.tanh %293 : vector<8x128xf32>
    %300 = vector.extract_strided_slice %298 {offsets = [0, 0], sizes = [8, 32], strides = [1, 1]} : vector<8x128xf32> to vector<8x32xf32>
    %301 = vector.extract_strided_slice %298 {offsets = [0, 32], sizes = [8, 32], strides = [1, 1]} : vector<8x128xf32> to vector<8x32xf32>
    %302 = vector.extract_strided_slice %299 {offsets = [0, 64], sizes = [8, 32], strides = [1, 1]} : vector<8x128xf32> to vector<8x32xf32>
    %303 = vector.extract_strided_slice %298 {offsets = [0, 96], sizes = [8, 32], strides = [1, 1]} : vector<8x128xf32> to vector<8x32xf32>
    %304 = arith.mulf %301, %265 : vector<8x32xf32>
    %305 = arith.mulf %300, %302 : vector<8x32xf32>
    %306 = arith.addf %304, %305 : vector<8x32xf32>
    %307 = math.tanh %306 : vector<8x32xf32>
    %308 = arith.mulf %303, %307 : vector<8x32xf32>
    %c4_i32_64 = arith.constant 4 : i32
    %309 = arith.muli %c1_i32_42, %c4_i32_64 : i32
    %c3_i32_65 = arith.constant 3 : i32
    %310 = arith.addi %309, %c3_i32_65 : i32
    %311 = arith.index_cast %310 : i32 to index
    %c0_66 = arith.constant 0 : index
    %c0_67 = arith.constant 0 : index
    %312 = vector.load %arg1[%311, %c0_66, %c0_67] : memref<8x8x128xf32, #tpu.memory_space<vmem>>, vector<1x8x128xf32>
    %313 = vector.shape_cast %312 : vector<1x8x128xf32> to vector<8x128xf32>
    %314 = arith.addf %313, %291 : vector<8x128xf32>
    %315 = arith.negf %314 : vector<8x128xf32>
    %316 = math.exp %315 : vector<8x128xf32>
    %cst_68 = arith.constant 1.000000e+00 : f32
    %317 = vector.broadcast %cst_68 : f32 to vector<8x128xf32>
    %318 = arith.addf %317, %316 : vector<8x128xf32>
    %319 = arith.divf %317, %318 : vector<8x128xf32>
    %320 = math.tanh %314 : vector<8x128xf32>
    %321 = vector.extract_strided_slice %319 {offsets = [0, 0], sizes = [8, 32], strides = [1, 1]} : vector<8x128xf32> to vector<8x32xf32>
    %322 = vector.extract_strided_slice %319 {offsets = [0, 32], sizes = [8, 32], strides = [1, 1]} : vector<8x128xf32> to vector<8x32xf32>
    %323 = vector.extract_strided_slice %320 {offsets = [0, 64], sizes = [8, 32], strides = [1, 1]} : vector<8x128xf32> to vector<8x32xf32>
    %324 = vector.extract_strided_slice %319 {offsets = [0, 96], sizes = [8, 32], strides = [1, 1]} : vector<8x128xf32> to vector<8x32xf32>
    %325 = arith.mulf %322, %286 : vector<8x32xf32>
    %326 = arith.mulf %321, %323 : vector<8x32xf32>
    %327 = arith.addf %325, %326 : vector<8x32xf32>
    %328 = math.tanh %327 : vector<8x32xf32>
    %329 = arith.mulf %324, %328 : vector<8x32xf32>
    %330 = tpu.concatenate %329, %308 in 1 : vector<8x32xf32>, vector<8x32xf32> -> vector<8x64xf32>
    %cst_69 = arith.constant dense<0.000000e+00> : vector<8x256xf32>
    %331 = tpu.matmul %330, %3, %cst_69 {dimension_numbers = #tpu.dot_dimension_numbers<[1], [0], [0], [1], [0, 0, 1, 1], [], []>} : vector<8x64xf32>, vector<64x256xf32>, vector<8x256xf32> -> vector<8x256xf32>
    %332 = vector.extract_strided_slice %331 {offsets = [0, 0], sizes = [8, 128], strides = [1, 1]} : vector<8x256xf32> to vector<8x128xf32>
    %333 = vector.extract_strided_slice %331 {offsets = [0, 128], sizes = [8, 128], strides = [1, 1]} : vector<8x256xf32> to vector<8x128xf32>
    %334 = arith.addf %333, %6 : vector<8x128xf32>
    %335 = arith.negf %334 : vector<8x128xf32>
    %336 = math.exp %335 : vector<8x128xf32>
    %cst_70 = arith.constant 1.000000e+00 : f32
    %337 = vector.broadcast %cst_70 : f32 to vector<8x128xf32>
    %338 = arith.addf %337, %336 : vector<8x128xf32>
    %339 = arith.divf %337, %338 : vector<8x128xf32>
    %340 = math.tanh %334 : vector<8x128xf32>
    %341 = vector.extract_strided_slice %339 {offsets = [0, 0], sizes = [8, 32], strides = [1, 1]} : vector<8x128xf32> to vector<8x32xf32>
    %342 = vector.extract_strided_slice %339 {offsets = [0, 32], sizes = [8, 32], strides = [1, 1]} : vector<8x128xf32> to vector<8x32xf32>
    %343 = vector.extract_strided_slice %340 {offsets = [0, 64], sizes = [8, 32], strides = [1, 1]} : vector<8x128xf32> to vector<8x32xf32>
    %344 = vector.extract_strided_slice %339 {offsets = [0, 96], sizes = [8, 32], strides = [1, 1]} : vector<8x128xf32> to vector<8x32xf32>
    %345 = arith.mulf %342, %306 : vector<8x32xf32>
    %346 = arith.mulf %341, %343 : vector<8x32xf32>
    %347 = arith.addf %345, %346 : vector<8x32xf32>
    %348 = math.tanh %347 : vector<8x32xf32>
    %349 = arith.mulf %344, %348 : vector<8x32xf32>
    %350 = tpu.concatenate %226, %267, %308, %349 in 1 : vector<8x32xf32>, vector<8x32xf32>, vector<8x32xf32>, vector<8x32xf32> -> vector<8x128xf32>
    %351 = arith.index_cast %c1_i32_42 : i32 to index
    %c0_71 = arith.constant 0 : index
    %c0_72 = arith.constant 0 : index
    %352 = vector.load %arg6[%351, %c0_71, %c0_72] : memref<2x8x128xf32, #tpu.memory_space<vmem>>, vector<1x8x128xf32>
    %353 = vector.shape_cast %352 : vector<1x8x128xf32> to vector<8x128xf32>
    %354 = vector.shape_cast %350 : vector<8x128xf32> to vector<1x8x128xf32>
    tpu.vector_store %arg6[%351, %c0_71, %c0_72], %354 {strides = array<i32>} : memref<2x8x128xf32, #tpu.memory_space<vmem>>, vector<1x8x128xf32>,
    %c2_i32_73 = arith.constant 2 : i32
    %c0_74 = arith.constant 0 : index
    %c0_75 = arith.constant 0 : index
    %c0_76 = arith.constant 0 : index
    %355 = vector.load %arg7[%c0_74, %c0_75, %c0_76] : memref<2x8x32xf32, #tpu.memory_space<vmem>>, vector<1x8x32xf32>
    %356 = vector.shape_cast %355 : vector<1x8x32xf32> to vector<8x32xf32>
    %357 = vector.shape_cast %329 : vector<8x32xf32> to vector<1x8x32xf32>
    tpu.vector_store %arg7[%c0_74, %c0_75, %c0_76], %357 {strides = array<i32>} : memref<2x8x32xf32, #tpu.memory_space<vmem>>, vector<1x8x32xf32>,
    %c1_77 = arith.constant 1 : index
    %c0_78 = arith.constant 0 : index
    %c0_79 = arith.constant 0 : index
    %358 = vector.load %arg7[%c1_77, %c0_78, %c0_79] : memref<2x8x32xf32, #tpu.memory_space<vmem>>, vector<1x8x32xf32>
    %359 = vector.shape_cast %358 : vector<1x8x32xf32> to vector<8x32xf32>
    %360 = vector.shape_cast %349 : vector<8x32xf32> to vector<1x8x32xf32>
    tpu.vector_store %arg7[%c1_77, %c0_78, %c0_79], %360 {strides = array<i32>} : memref<2x8x32xf32, #tpu.memory_space<vmem>>, vector<1x8x32xf32>,
    %c0_80 = arith.constant 0 : index
    %c0_81 = arith.constant 0 : index
    %c0_82 = arith.constant 0 : index
    %361 = vector.load %arg8[%c0_80, %c0_81, %c0_82] : memref<2x8x32xf32, #tpu.memory_space<vmem>>, vector<1x8x32xf32>
    %362 = vector.shape_cast %361 : vector<1x8x32xf32> to vector<8x32xf32>
    %363 = vector.shape_cast %327 : vector<8x32xf32> to vector<1x8x32xf32>
    tpu.vector_store %arg8[%c0_80, %c0_81, %c0_82], %363 {strides = array<i32>} : memref<2x8x32xf32, #tpu.memory_space<vmem>>, vector<1x8x32xf32>,
    %c1_83 = arith.constant 1 : index
    %c0_84 = arith.constant 0 : index
    %c0_85 = arith.constant 0 : index
    %364 = vector.load %arg8[%c1_83, %c0_84, %c0_85] : memref<2x8x32xf32, #tpu.memory_space<vmem>>, vector<1x8x32xf32>
    %365 = vector.shape_cast %364 : vector<1x8x32xf32> to vector<8x32xf32>
    %366 = vector.shape_cast %347 : vector<8x32xf32> to vector<1x8x32xf32>
    tpu.vector_store %arg8[%c1_83, %c0_84, %c0_85], %366 {strides = array<i32>} : memref<2x8x32xf32, #tpu.memory_space<vmem>>, vector<1x8x32xf32>,
    return
  }
  func.func @transform_0(%arg0: i32) -> (i32, i32, i32) {
    %c0_i32 = arith.constant 0 : i32
    %c0_i32_0 = arith.constant 0 : i32
    %c0_i32_1 = arith.constant 0 : i32
    return %arg0, %c0_i32, %c0_i32_0 : i32, i32, i32
  }
  func.func @transform_1(%arg0: i32) -> (i32, i32) {
    %c0_i32 = arith.constant 0 : i32
    %c0_i32_0 = arith.constant 0 : i32
    %c0_i32_1 = arith.constant 0 : i32
    return %c0_i32, %c0_i32_0 : i32, i32
  }
  func.func @transform_2(%arg0: i32) -> (i32, i32) {
    %c0_i32 = arith.constant 0 : i32
    %c0_i32_0 = arith.constant 0 : i32
    %c0_i32_1 = arith.constant 0 : i32
    return %c0_i32, %c0_i32_0 : i32, i32
  }
  func.func @transform_3(%arg0: i32) -> (i32, i32, i32) {
    %c0_i32 = arith.constant 0 : i32
    %c0_i32_0 = arith.constant 0 : i32
    %c0_i32_1 = arith.constant 0 : i32
    %c0_i32_2 = arith.constant 0 : i32
    return %c0_i32, %c0_i32_0, %c0_i32_1 : i32, i32, i32
  }
  func.func @transform_4(%arg0: i32) -> (i32, i32, i32) {
    %c0_i32 = arith.constant 0 : i32
    %c0_i32_0 = arith.constant 0 : i32
    %c0_i32_1 = arith.constant 0 : i32
    %c0_i32_2 = arith.constant 0 : i32
    return %c0_i32, %c0_i32_0, %c0_i32_1 : i32, i32, i32
  }
  func.func @transform_5(%arg0: i32) -> (i32, i32, i32) {
    %c0_i32 = arith.constant 0 : i32
    %c0_i32_0 = arith.constant 0 : i32
    %c0_i32_1 = arith.constant 0 : i32
    return %arg0, %c0_i32, %c0_i32_0 : i32, i32, i32
  }
  func.func @transform_6(%arg0: i32) -> (i32, i32, i32) {
    %c0_i32 = arith.constant 0 : i32
    %c0_i32_0 = arith.constant 0 : i32
    %c0_i32_1 = arith.constant 0 : i32
    %c0_i32_2 = arith.constant 0 : i32
    return %c0_i32, %c0_i32_0, %c0_i32_1 : i32, i32, i32
  }
  func.func @transform_7(%arg0: i32) -> (i32, i32, i32) {
    %c0_i32 = arith.constant 0 : i32
    %c0_i32_0 = arith.constant 0 : i32
    %c0_i32_1 = arith.constant 0 : i32
    %c0_i32_2 = arith.constant 0 : i32
    return %c0_i32, %c0_i32_0, %c0_i32_1 : i32, i32, i32
  }
}

</mosaic_0001>

<llo_original>
// kernel: tpu_custom_call.1
$region0: #{tpu_custom_call.1}
  #allocation0 [shape = 'u32[]', space=smem, size = 0x4, offset = 0x4, fixed_abs, tag = 'smem constant byte address 0x4 - core index']
  #allocation1 [shape = 'u32[144,128]{1,0:T(1,128)}', space=vmem, size = 0x12000, scoped, tag = 'internal scratch']
  %s0 = inlined_call_operand.hbm [shape: f32[8,8,128], index: 0, kind: input, shape index: {}]
  %s1 = inlined_call_operand.hbm [shape: f32[64,256], index: 1, kind: input, shape index: {}]
  %s2 = inlined_call_operand.vmem [shape: f32[1,128], index: 2, kind: input, shape index: {}]
  %s3 = inlined_call_operand.hbm [shape: f32[2,8,32], index: 3, kind: input, shape index: {}]
  %s4 = inlined_call_operand.hbm [shape: f32[2,8,32], index: 4, kind: input, shape index: {}]
  %s5 = inlined_call_operand.hbm [shape: f32[2,8,128], index: 5, kind: output, shape index: {0}]
  %s6 = inlined_call_operand.hbm [shape: f32[2,8,32], index: 6, kind: output, shape index: {1}]
  %s7 = inlined_call_operand.hbm [shape: f32[2,8,32], index: 7, kind: output, shape index: {2}]
  %8 = xla_tuple %s5, %s6, %s7
  %s9 = sld [smem:[#allocation0]]
  $region66: #{tpu_custom_call.1} parent=0
    _
  %s11 = ssub.s32 1, %s9
  %s12 = scalar_select 0, %s11, %s9
  $region1: #{tpu_custom_call.1} parent=0
    #allocation2 [shape = 'u8[32768]{0}', space=vmem, size = 0x8000, scoped, tag = 'input window, operand 0, single buffered']
    #allocation3 [shape = 's32[1]{0}', space=sflag, size = 0x4, scoped, tag = 'scoped memory for tpu_custom_call.1']
    #allocation4 [shape = 's32[1]{0}', space=sflag, size = 0x4, scoped, tag = 'scoped memory for tpu_custom_call.1']
    #allocation5 [shape = 'u8[65536]{0}', space=vmem, size = 0x10000, scoped, tag = 'input window, operand 1, single buffered']
    #allocation6 [shape = 's32[1]{0}', space=sflag, size = 0x4, scoped, tag = 'scoped memory for tpu_custom_call.1']
    #allocation7 [shape = 'u8[8192]{0}', space=vmem, size = 0x2000, scoped, tag = 'input window, operand 3, single buffered']
    #allocation8 [shape = 'u8[8192]{0}', space=vmem, size = 0x2000, scoped, tag = 'input window, operand 4, single buffered']
    #allocation9 [shape = 's32[1]{0}', space=sflag, size = 0x4, scoped, tag = 'scoped memory for tpu_custom_call.1']
    #allocation10 [shape = 'u8[8192]{0}', space=vmem, size = 0x2000, scoped, tag = 'output window, operand 0, single buffered']
    #allocation11 [shape = 'u8[8192]{0}', space=vmem, size = 0x2000, scoped, tag = 'output window, operand 1, single buffered']
    #allocation12 [shape = 's32[1]{0}', space=sflag, size = 0x4, scoped, tag = 'scoped memory for tpu_custom_call.1']
    #allocation13 [shape = 'u8[8192]{0}', space=vmem, size = 0x2000, scoped, tag = 'output window, operand 2, single buffered']
    %13 = vsyncpa [#allocation3], 0
    %14 = vsyncpa [#allocation6], 0
    %15 = vsyncpa [#allocation9], 0
    %16 = vsyncpa [#allocation4], 0
    %17 = vsyncpa [#allocation12], 0
    // Predicated region
    $region2: #{tpu_custom_call.1} parent=1 // pred_check
      _
    $region3: #{tpu_custom_call.1} parent=1 // pred_check_branch
      %19 = sbr.rel (0) target = $region5
    $region4: #{tpu_custom_call.1} parent=1 // pred_region
      %s21 = ssub.s32 1024, 1024
      %22 = vsyncadd [#allocation3], %s21
      %s23 = sshll.u32 [#allocation2], 4
      %s24 = int_to_ptr.vmem [resolvable:$true] %s23
      %29 = dma.hbm_to_vmem [thread:$0]  %s0, 1024, %s24, [#allocation3], 128, 128, 8
    $region5: #{tpu_custom_call.1} parent=1 // pred_fallthru
      _
    // Predicated region
    $region6: #{tpu_custom_call.1} parent=1 // pred_check
      _
    $region7: #{tpu_custom_call.1} parent=1 // pred_check_branch
      %31 = sbr.rel (0) target = $region9
    $region8: #{tpu_custom_call.1} parent=1 // pred_region
      %s33 = ssub.s32 2048, 2048
      %34 = vsyncadd [#allocation6], %s33
      %s35 = sshll.u32 [#allocation5], 4
      %s36 = int_to_ptr.vmem [resolvable:$true] %s35
      %41 = dma.hbm_to_vmem [thread:$0]  %s1, 2048, %s36, [#allocation6], 256, 256, 16
    $region9: #{tpu_custom_call.1} parent=1 // pred_fallthru
      _
    // Predicated region
    $region10: #{tpu_custom_call.1} parent=1 // pred_check
      _
    $region11: #{tpu_custom_call.1} parent=1 // pred_check_branch
      %43 = sbr.rel (0) target = $region13
    $region12: #{tpu_custom_call.1} parent=1 // pred_region
      _
    $region13: #{tpu_custom_call.1} parent=1 // pred_fallthru
      _
    // Predicated region
    $region14: #{tpu_custom_call.1} parent=1 // pred_check
      _
    $region15: #{tpu_custom_call.1} parent=1 // pred_check_branch
      %45 = sbr.rel (0) target = $region17
    $region16: #{tpu_custom_call.1} parent=1 // pred_region
      %s47 = ssub.s32 256, 256
      %48 = vsyncadd [#allocation6], %s47
      %s49 = sshll.u32 [#allocation7], 4
      %s50 = int_to_ptr.vmem [resolvable:$true] %s49
      %55 = dma.hbm_to_vmem [thread:$0]  %s3, 256, %s50, [#allocation6], 128, 128, 8
    $region17: #{tpu_custom_call.1} parent=1 // pred_fallthru
      _
    // Predicated region
    $region18: #{tpu_custom_call.1} parent=1 // pred_check
      _
    $region19: #{tpu_custom_call.1} parent=1 // pred_check_branch
      %57 = sbr.rel (0) target = $region21
    $region20: #{tpu_custom_call.1} parent=1 // pred_region
      %s59 = ssub.s32 256, 256
      %60 = vsyncadd [#allocation9], %s59
      %s61 = sshll.u32 [#allocation8], 4
      %s62 = int_to_ptr.vmem [resolvable:$true] %s61
      %67 = dma.hbm_to_vmem [thread:$0]  %s4, 256, %s62, [#allocation9], 128, 128, 8
    $region21: #{tpu_custom_call.1} parent=1 // pred_fallthru
      _
    // Predicated region
    $region22: #{tpu_custom_call.1} parent=1 // pred_check
      _
    $region23: #{tpu_custom_call.1} parent=1 // pred_check_branch
      %69 = sbr.rel (0) target = $region25
    $region24: #{tpu_custom_call.1} parent=1 // pred_region
      %70 = dma.done [#allocation3], 1024
    $region25: #{tpu_custom_call.1} parent=1 // pred_fallthru
      _
    // Predicated region
    $region26: #{tpu_custom_call.1} parent=1 // pred_check
      _
    $region27: #{tpu_custom_call.1} parent=1 // pred_check_branch
      %72 = sbr.rel (0) target = $region29
    $region28: #{tpu_custom_call.1} parent=1 // pred_region
      %73 = dma.done [#allocation6], 2048
    $region29: #{tpu_custom_call.1} parent=1 // pred_fallthru
      _
    // Predicated region
    $region30: #{tpu_custom_call.1} parent=1 // pred_check
      _
    $region31: #{tpu_custom_call.1} parent=1 // pred_check_branch
      %75 = sbr.rel (0) target = $region33
    $region32: #{tpu_custom_call.1} parent=1 // pred_region
      %76 = dma.done [#allocation6], 256
    $region33: #{tpu_custom_call.1} parent=1 // pred_fallthru
      _
    // Predicated region
    $region34: #{tpu_custom_call.1} parent=1 // pred_check
      _
    $region35: #{tpu_custom_call.1} parent=1 // pred_check_branch
      %78 = sbr.rel (0) target = $region37
    $region36: #{tpu_custom_call.1} parent=1 // pred_region
      %79 = dma.done [#allocation9], 256
    $region37: #{tpu_custom_call.1} parent=1 // pred_fallthru
      _
    %p80 = scmp.eq.s32.totalorder 0, 0
    // Predicated region
    $region38: #{tpu_custom_call.1} parent=1 // pred_check
      %p81 = pneg %p80
    $region39: #{tpu_custom_call.1} parent=1 // pred_check_branch
      %83 = sbr.rel (%p81) target = $region41
    $region40: #{tpu_custom_call.1} parent=1 // pred_region
      %v84 = vld [vmem:[#allocation7] sm:$0xff]
      %v85 = vld [vmem:[#allocation7 + $0x8] sm:$0xff]
      %vm86 = vcmask 261120
      %87 = vst.msk [vmem:[#allocation11] sm:$0xff] %vm86, %v84
      %88 = vst.msk [vmem:[#allocation11 + $0x8] sm:$0xff] %vm86, %v85
      %v89 = vld [vmem:[#allocation8] sm:$0xff]
      %v90 = vld [vmem:[#allocation8 + $0x8] sm:$0xff]
      %91 = vst.msk [vmem:[#allocation13] sm:$0xff] %vm86, %v89
      %92 = vst.msk [vmem:[#allocation13 + $0x8] sm:$0xff] %vm86, %v90
    $region41: #{tpu_custom_call.1} parent=1 // pred_fallthru
      _
    %v93 = vld [vmem:[#allocation5] sm:$0xff]
    %v94 = vld [vmem:[#allocation5 + $0x8] sm:$0xff]
    %v95 = vld [vmem:[#allocation5 + $0x10] sm:$0xff]
    %v96 = vld [vmem:[#allocation5 + $0x18] sm:$0xff]
    %v97 = vld [vmem:[#allocation5 + $0x20] sm:$0xff]
    %v98 = vld [vmem:[#allocation5 + $0x28] sm:$0xff]
    %v99 = vld [vmem:[#allocation5 + $0x30] sm:$0xff]
    %v100 = vld [vmem:[#allocation5 + $0x38] sm:$0xff]
    %v101 = vld [vmem:[#allocation5 + $0x40] sm:$0xff]
    %v102 = vld [vmem:[#allocation5 + $0x48] sm:$0xff]
    %v103 = vld [vmem:[#allocation5 + $0x50] sm:$0xff]
    %v104 = vld [vmem:[#allocation5 + $0x58] sm:$0xff]
    %v105 = vld [vmem:[#allocation5 + $0x60] sm:$0xff]
    %v106 = vld [vmem:[#allocation5 + $0x68] sm:$0xff]
    %v107 = vld [vmem:[#allocation5 + $0x70] sm:$0xff]
    %v108 = vld [vmem:[#allocation5 + $0x78] sm:$0xff]
    %v109 = vld [vmem:[%s2] sm:$0x1]
    %v111 = vlaneseq
    %v112 = vshrl.u32 %v111, 7
    %v113 = vsub.s32 0, %v112
    %v114 = vrot.slane %v109, %v113
    %v116 = vld [vmem:[#allocation11] sm:$0xff]
    %s117 = scalar_lea.vmem [#allocation11], 8
    %v118 = vld [vmem:[%s117] sm:$0xff]
    %v119 = vld [vmem:[#allocation13] sm:$0xff]
    %s120 = scalar_lea.vmem [#allocation13], 8
    %v121 = vld [vmem:[%s120] sm:$0xff]
    %vm122 = vcmask 261120
    %v124 = vsel %vm122, %v116, 0
    %126 = vmatprep.subr.mxu0 0.0
    %127 = vmatpush1.msra.mxu0 %v93
    %128 = vmatprep.subr.mxu0 0.0
    %129 = vmatpush1.msra.mxu0 %v95
    %130 = vmatprep.subr.mxu0 0.0
    %131 = vmatpush1.msra.mxu0 %v97
    %132 = vmatprep.subr.mxu0 0.0
    %133 = vmatpush1.msra.mxu0 %v99
    %134 = vmatprep.subr.mxu0 0.0
    %135 = vmatpush1.msra.mxu0 0.0
    %136 = vmatprep.subr.mxu0 0.0
    %137 = vmatpush1.msra.mxu0 0.0
    %138 = vmatprep.subr.mxu0 0.0
    %139 = vmatpush1.msra.mxu0 0.0
    %140 = vmatprep.subr.mxu0 0.0
    %141 = vmatpush1.msra.mxu0 0.0
    %142 = vmatprep.subr.mxu0 0.0
    %143 = vmatpush1.msra.mxu0 0.0
    %144 = vmatprep.subr.mxu0 0.0
    %145 = vmatpush1.msra.mxu0 0.0
    %146 = vmatprep.subr.mxu0 0.0
    %147 = vmatpush1.msra.mxu0 0.0
    %148 = vmatprep.subr.mxu0 0.0
    %149 = vmatpush1.msra.mxu0 0.0
    %150 = vmatprep.subr.mxu0 0.0
    %151 = vmatpush1.msra.mxu0 0.0
    %152 = vmatprep.subr.mxu0 0.0
    %153 = vmatpush1.msra.mxu0 0.0
    %154 = vmatprep.subr.mxu0 0.0
    %155 = vmatpush1.msra.mxu0 0.0
    %156 = vmatprep.subr.mxu0 0.0
    %157 = vmatpush1.msra.mxu0 0.0
    %158 = vmatprep.subr.mxu0 0.0
    %159 = vmatpush1.msra.mxu0 0.0
    %160 = vmatprep.subr.mxu0 0.0
    %161 = vmatpush1.msra.mxu0 0.0
    %162 = vmatprep.subr.mxu0 0.0
    %163 = vmatpush1.msra.mxu0 0.0
    %164 = vmatprep.subr.mxu0 0.0
    %165 = vmatpush1.msra.mxu0 0.0
    %166 = vmatprep.subr.mxu0 0.0
    %167 = vmatpush1.msra.mxu0 0.0
    %168 = vmatprep.subr.mxu0 0.0
    %169 = vmatpush1.msra.mxu0 0.0
    %170 = vmatprep.subr.mxu0 0.0
    %171 = vmatpush1.msra.mxu0 0.0
    %172 = vmatprep.subr.mxu0 0.0
    %173 = vmatpush1.msra.mxu0 0.0
    %174 = vmatprep.subr.mxu0 0.0
    %175 = vmatpush1.msra.mxu0 0.0
    %176 = vmatprep.subr.mxu0 0.0
    %177 = vmatpush1.msra.mxu0 0.0
    %178 = vmatprep.subr.mxu0 0.0
    %179 = vmatpush1.msra.mxu0 0.0
    %180 = vmatprep.subr.mxu0 0.0
    %181 = vmatpush1.msra.mxu0 0.0
    %182 = vmatprep.subr.mxu0 0.0
    %183 = vmatpush1.msra.mxu0 0.0
    %184 = vmatprep.subr.mxu0 0.0
    %185 = vmatpush1.msra.mxu0 0.0
    %186 = vmatprep.subr.mxu0 0.0
    %187 = vmatpush1.msra.mxu0 0.0
    %188 = vmatprep.subr.mxu0 0.0
    %189 = vmatpush1.msra.mxu0 0.0
    %190 = vmatprep.mubr.f32.mxu0 0.0
    %191 = vmatmul.mubr.f32.gmra.mrb[0].mxu0 %v124
    %v192 = vpop.f32.mrb[0].mxu0
    %v193 = vadd.f32 0.0, %v192
    %v194 = vpop.f32.mrb[0].mxu0
    %195 = vdwg.mxu0
    %v196 = vld [vmem:[#allocation2] sm:$0xff]
    %v197 = vadd.f32 %v196, %v193
    %v198 = vxor.u32 %v197, 2147483648
    %v199 = vmul.f32 %v198, 1.442695
    %v200 = vpow.pop %v199
    %v201 = vadd.f32 %v200, 1.0
    %v202 = vrcp.pop %v201
    %v203 = vmul.f32 1.0, %v202
    %v204 = vtanh.pop %v197
    %206 = vrot.lane.b32.xlu0 %v119, 32
    %v207 = vpop.permute.xlu0 %206
    %v209 = vmul.f32 %v203, %v207
    %211 = vrot.lane.b32.xlu0 %v204, 64
    %v212 = vpop.permute.xlu0 %211
    %v214 = vmul.f32 %v203, %v212
    %216 = vrot.lane.b32.xlu0 %v214, 32
    %v217 = vpop.permute.xlu0 %216
    %v219 = vadd.f32 %v209, %v217
    %v220 = vtanh.pop %v219
    %222 = vrot.lane.b32.xlu0 %v220, 64
    %v223 = vpop.permute.xlu0 %222
    %v225 = vmul.f32 %v203, %v223
    %227 = vrot.lane.b32.xlu0 %v225, 32
    %v228 = vpop.permute.xlu0 %227
    %231 = vrot.lane.b32.xlu0 %v118, 32
    %v232 = vpop.permute.xlu0 %231
    %v234 = vsel %vm122, %v228, %v232
    %vm235 = vcmask 523264
    %v237 = vsel %vm235, %v234, 0
    %239 = vmatprep.subr.mxu0 %v94
    %240 = vmatpush1.msra.mxu0 %v93
    %241 = vmatprep.subr.mxu0 %v96
    %242 = vmatpush1.msra.mxu0 %v95
    %243 = vmatprep.subr.mxu0 %v98
    %244 = vmatpush1.msra.mxu0 %v97
    %245 = vmatprep.subr.mxu0 %v100
    %246 = vmatpush1.msra.mxu0 %v99
    %247 = vmatprep.subr.mxu0 %v102
    %248 = vmatpush1.msra.mxu0 %v101
    %249 = vmatprep.subr.mxu0 %v104
    %250 = vmatpush1.msra.mxu0 %v103
    %251 = vmatprep.subr.mxu0 %v106
    %252 = vmatpush1.msra.mxu0 %v105
    %253 = vmatprep.subr.mxu0 %v108
    %254 = vmatpush1.msra.mxu0 %v107
    %255 = vmatprep.subr.mxu0 0.0
    %256 = vmatpush1.msra.mxu0 0.0
    %257 = vmatprep.subr.mxu0 0.0
    %258 = vmatpush1.msra.mxu0 0.0
    %259 = vmatprep.subr.mxu0 0.0
    %260 = vmatpush1.msra.mxu0 0.0
    %261 = vmatprep.subr.mxu0 0.0
    %262 = vmatpush1.msra.mxu0 0.0
    %263 = vmatprep.subr.mxu0 0.0
    %264 = vmatpush1.msra.mxu0 0.0
    %265 = vmatprep.subr.mxu0 0.0
    %266 = vmatpush1.msra.mxu0 0.0
    %267 = vmatprep.subr.mxu0 0.0
    %268 = vmatpush1.msra.mxu0 0.0
    %269 = vmatprep.subr.mxu0 0.0
    %270 = vmatpush1.msra.mxu0 0.0
    %271 = vmatprep.subr.mxu0 0.0
    %272 = vmatpush1.msra.mxu0 0.0
    %273 = vmatprep.subr.mxu0 0.0
    %274 = vmatpush1.msra.mxu0 0.0
    %275 = vmatprep.subr.mxu0 0.0
    %276 = vmatpush1.msra.mxu0 0.0
    %277 = vmatprep.subr.mxu0 0.0
    %278 = vmatpush1.msra.mxu0 0.0
    %279 = vmatprep.subr.mxu0 0.0
    %280 = vmatpush1.msra.mxu0 0.0
    %281 = vmatprep.subr.mxu0 0.0
    %282 = vmatpush1.msra.mxu0 0.0
    %283 = vmatprep.subr.mxu0 0.0
    %284 = vmatpush1.msra.mxu0 0.0
    %285 = vmatprep.subr.mxu0 0.0
    %286 = vmatpush1.msra.mxu0 0.0
    %287 = vmatprep.subr.mxu0 0.0
    %288 = vmatpush1.msra.mxu0 0.0
    %289 = vmatprep.subr.mxu0 0.0
    %290 = vmatpush1.msra.mxu0 0.0
    %291 = vmatprep.subr.mxu0 0.0
    %292 = vmatpush1.msra.mxu0 0.0
    %293 = vmatprep.subr.mxu0 0.0
    %294 = vmatpush1.msra.mxu0 0.0
    %295 = vmatprep.subr.mxu0 0.0
    %296 = vmatpush1.msra.mxu0 0.0
    %297 = vmatprep.subr.mxu0 0.0
    %298 = vmatpush1.msra.mxu0 0.0
    %299 = vmatprep.subr.mxu0 0.0
    %300 = vmatpush1.msra.mxu0 0.0
    %301 = vmatprep.subr.mxu0 0.0
    %302 = vmatpush1.msra.mxu0 0.0
    %303 = vmatprep.mubr.f32.mxu0 0.0
    %304 = vmatmul.mubr.f32.gmra.mrb[0].mxu0 %v237
    %v305 = vpop.f32.mrb[0].mxu0
    %v306 = vadd.f32 0.0, %v305
    %v307 = vpop.f32.mrb[0].mxu0
    %v308 = vadd.f32 0.0, %v307
    %309 = vdwg.mxu0
    %v310 = vadd.f32 %v308, %v114
    %v311 = vxor.u32 %v310, 2147483648
    %v312 = vmul.f32 %v311, 1.442695
    %v313 = vpow.pop %v312
    %v314 = vadd.f32 %v313, 1.0
    %v315 = vrcp.pop %v314
    %v316 = vmul.f32 1.0, %v315
    %v317 = vtanh.pop %v310
    %319 = vrot.lane.b32.xlu0 %v121, 32
    %v320 = vpop.permute.xlu0 %319
    %v322 = vmul.f32 %v316, %v320
    %324 = vrot.lane.b32.xlu0 %v317, 64
    %v325 = vpop.permute.xlu0 %324
    %v327 = vmul.f32 %v316, %v325
    %329 = vrot.lane.b32.xlu0 %v327, 32
    %v330 = vpop.permute.xlu0 %329
    %v332 = vadd.f32 %v322, %v330
    %v333 = vtanh.pop %v332
    %335 = vrot.lane.b32.xlu0 %v333, 64
    %v336 = vpop.permute.xlu0 %335
    %v338 = vmul.f32 %v316, %v336
    %s339 = scalar_lea.vmem [#allocation2], 8
    %v340 = vld [vmem:[%s339] sm:$0xff]
    %v341 = vadd.f32 %v340, %v306
    %v342 = vxor.u32 %v341, 2147483648
    %v343 = vmul.f32 %v342, 1.442695
    %v344 = vpow.pop %v343
    %v345 = vadd.f32 %v344, 1.0
    %v346 = vrcp.pop %v345
    %v347 = vmul.f32 1.0, %v346
    %v348 = vtanh.pop %v341
    %v349 = vmul.f32 %v347, %v219
    %351 = vrot.lane.b32.xlu0 %v348, 64
    %v352 = vpop.permute.xlu0 %351
    %v354 = vmul.f32 %v347, %v352
    %356 = vrot.lane.b32.xlu0 %v354, 32
    %v357 = vpop.permute.xlu0 %356
    %v359 = vadd.f32 %v349, %v357
    %v360 = vtanh.pop %v359
    %362 = vrot.lane.b32.xlu0 %v360, 64
    %v363 = vpop.permute.xlu0 %362
    %v365 = vmul.f32 %v347, %v363
    %367 = vrot.lane.b32.xlu0 %v365, 32
    %v368 = vpop.permute.xlu0 %367
    %371 = vrot.lane.b32.xlu0 %v338, 64
    %v372 = vpop.permute.xlu0 %371
    %v374 = vsel %vm122, %v368, %v372
    %v376 = vsel %vm235, %v374, 0
    %378 = vmatprep.subr.mxu0 %v94
    %379 = vmatpush1.msra.mxu0 %v93
    %380 = vmatprep.subr.mxu0 %v96
    %381 = vmatpush1.msra.mxu0 %v95
    %382 = vmatprep.subr.mxu0 %v98
    %383 = vmatpush1.msra.mxu0 %v97
    %384 = vmatprep.subr.mxu0 %v100
    %385 = vmatpush1.msra.mxu0 %v99
    %386 = vmatprep.subr.mxu0 %v102
    %387 = vmatpush1.msra.mxu0 %v101
    %388 = vmatprep.subr.mxu0 %v104
    %389 = vmatpush1.msra.mxu0 %v103
    %390 = vmatprep.subr.mxu0 %v106
    %391 = vmatpush1.msra.mxu0 %v105
    %392 = vmatprep.subr.mxu0 %v108
    %393 = vmatpush1.msra.mxu0 %v107
    %394 = vmatprep.subr.mxu0 0.0
    %395 = vmatpush1.msra.mxu0 0.0
    %396 = vmatprep.subr.mxu0 0.0
    %397 = vmatpush1.msra.mxu0 0.0
    %398 = vmatprep.subr.mxu0 0.0
    %399 = vmatpush1.msra.mxu0 0.0
    %400 = vmatprep.subr.mxu0 0.0
    %401 = vmatpush1.msra.mxu0 0.0
    %402 = vmatprep.subr.mxu0 0.0
    %403 = vmatpush1.msra.mxu0 0.0
    %404 = vmatprep.subr.mxu0 0.0
    %405 = vmatpush1.msra.mxu0 0.0
    %406 = vmatprep.subr.mxu0 0.0
    %407 = vmatpush1.msra.mxu0 0.0
    %408 = vmatprep.subr.mxu0 0.0
    %409 = vmatpush1.msra.mxu0 0.0
    %410 = vmatprep.subr.mxu0 0.0
    %411 = vmatpush1.msra.mxu0 0.0
    %412 = vmatprep.subr.mxu0 0.0
    %413 = vmatpush1.msra.mxu0 0.0
    %414 = vmatprep.subr.mxu0 0.0
    %415 = vmatpush1.msra.mxu0 0.0
    %416 = vmatprep.subr.mxu0 0.0
    %417 = vmatpush1.msra.mxu0 0.0
    %418 = vmatprep.subr.mxu0 0.0
    %419 = vmatpush1.msra.mxu0 0.0
    %420 = vmatprep.subr.mxu0 0.0
    %421 = vmatpush1.msra.mxu0 0.0
    %422 = vmatprep.subr.mxu0 0.0
    %423 = vmatpush1.msra.mxu0 0.0
    %424 = vmatprep.subr.mxu0 0.0
    %425 = vmatpush1.msra.mxu0 0.0
    %426 = vmatprep.subr.mxu0 0.0
    %427 = vmatpush1.msra.mxu0 0.0
    %428 = vmatprep.subr.mxu0 0.0
    %429 = vmatpush1.msra.mxu0 0.0
    %430 = vmatprep.subr.mxu0 0.0
    %431 = vmatpush1.msra.mxu0 0.0
    %432 = vmatprep.subr.mxu0 0.0
    %433 = vmatpush1.msra.mxu0 0.0
    %434 = vmatprep.subr.mxu0 0.0
    %435 = vmatpush1.msra.mxu0 0.0
    %436 = vmatprep.subr.mxu0 0.0
    %437 = vmatpush1.msra.mxu0 0.0
    %438 = vmatprep.subr.mxu0 0.0
    %439 = vmatpush1.msra.mxu0 0.0
    %440 = vmatprep.subr.mxu0 0.0
    %441 = vmatpush1.msra.mxu0 0.0
    %442 = vmatprep.mubr.f32.mxu0 0.0
    %443 = vmatmul.mubr.f32.gmra.mrb[0].mxu0 %v376
    %v444 = vpop.f32.mrb[0].mxu0
    %v445 = vadd.f32 0.0, %v444
    %v446 = vpop.f32.mrb[0].mxu0
    %v447 = vadd.f32 0.0, %v446
    %448 = vdwg.mxu0
    %v449 = vadd.f32 %v447, %v114
    %v450 = vxor.u32 %v449, 2147483648
    %v451 = vmul.f32 %v450, 1.442695
    %v452 = vpow.pop %v451
    %v453 = vadd.f32 %v452, 1.0
    %v454 = vrcp.pop %v453
    %v455 = vmul.f32 1.0, %v454
    %v456 = vtanh.pop %v449
    %v457 = vmul.f32 %v455, %v332
    %459 = vrot.lane.b32.xlu0 %v456, 64
    %v460 = vpop.permute.xlu0 %459
    %v462 = vmul.f32 %v455, %v460
    %464 = vrot.lane.b32.xlu0 %v462, 32
    %v465 = vpop.permute.xlu0 %464
    %v467 = vadd.f32 %v457, %v465
    %v468 = vtanh.pop %v467
    %470 = vrot.lane.b32.xlu0 %v468, 64
    %v471 = vpop.permute.xlu0 %470
    %v473 = vmul.f32 %v455, %v471
    %s474 = scalar_lea.vmem [#allocation2], 16
    %v475 = vld [vmem:[%s474] sm:$0xff]
    %v476 = vadd.f32 %v475, %v445
    %v477 = vxor.u32 %v476, 2147483648
    %v478 = vmul.f32 %v477, 1.442695
    %v479 = vpow.pop %v478
    %v480 = vadd.f32 %v479, 1.0
    %v481 = vrcp.pop %v480
    %v482 = vmul.f32 1.0, %v481
    %v483 = vtanh.pop %v476
    %v484 = vmul.f32 %v482, %v359
    %486 = vrot.lane.b32.xlu0 %v483, 64
    %v487 = vpop.permute.xlu0 %486
    %v489 = vmul.f32 %v482, %v487
    %491 = vrot.lane.b32.xlu0 %v489, 32
    %v492 = vpop.permute.xlu0 %491
    %v494 = vadd.f32 %v484, %v492
    %v495 = vtanh.pop %v494
    %497 = vrot.lane.b32.xlu0 %v495, 64
    %v498 = vpop.permute.xlu0 %497
    %v500 = vmul.f32 %v482, %v498
    %502 = vrot.lane.b32.xlu0 %v500, 32
    %v503 = vpop.permute.xlu0 %502
    %506 = vrot.lane.b32.xlu0 %v473, 64
    %v507 = vpop.permute.xlu0 %506
    %v509 = vsel %vm122, %v503, %v507
    %v511 = vsel %vm235, %v509, 0
    %513 = vmatprep.subr.mxu0 %v94
    %514 = vmatpush1.msra.mxu0 %v93
    %515 = vmatprep.subr.mxu0 %v96
    %516 = vmatpush1.msra.mxu0 %v95
    %517 = vmatprep.subr.mxu0 %v98
    %518 = vmatpush1.msra.mxu0 %v97
    %519 = vmatprep.subr.mxu0 %v100
    %520 = vmatpush1.msra.mxu0 %v99
    %521 = vmatprep.subr.mxu0 %v102
    %522 = vmatpush1.msra.mxu0 %v101
    %523 = vmatprep.subr.mxu0 %v104
    %524 = vmatpush1.msra.mxu0 %v103
    %525 = vmatprep.subr.mxu0 %v106
    %526 = vmatpush1.msra.mxu0 %v105
    %527 = vmatprep.subr.mxu0 %v108
    %528 = vmatpush1.msra.mxu0 %v107
    %529 = vmatprep.subr.mxu0 0.0
    %530 = vmatpush1.msra.mxu0 0.0
    %531 = vmatprep.subr.mxu0 0.0
    %532 = vmatpush1.msra.mxu0 0.0
    %533 = vmatprep.subr.mxu0 0.0
    %534 = vmatpush1.msra.mxu0 0.0
    %535 = vmatprep.subr.mxu0 0.0
    %536 = vmatpush1.msra.mxu0 0.0
    %537 = vmatprep.subr.mxu0 0.0
    %538 = vmatpush1.msra.mxu0 0.0
    %539 = vmatprep.subr.mxu0 0.0
    %540 = vmatpush1.msra.mxu0 0.0
    %541 = vmatprep.subr.mxu0 0.0
    %542 = vmatpush1.msra.mxu0 0.0
    %543 = vmatprep.subr.mxu0 0.0
    %544 = vmatpush1.msra.mxu0 0.0
    %545 = vmatprep.subr.mxu0 0.0
    %546 = vmatpush1.msra.mxu0 0.0
    %547 = vmatprep.subr.mxu0 0.0
    %548 = vmatpush1.msra.mxu0 0.0
    %549 = vmatprep.subr.mxu0 0.0
    %550 = vmatpush1.msra.mxu0 0.0
    %551 = vmatprep.subr.mxu0 0.0
    %552 = vmatpush1.msra.mxu0 0.0
    %553 = vmatprep.subr.mxu0 0.0
    %554 = vmatpush1.msra.mxu0 0.0
    %555 = vmatprep.subr.mxu0 0.0
    %556 = vmatpush1.msra.mxu0 0.0
    %557 = vmatprep.subr.mxu0 0.0
    %558 = vmatpush1.msra.mxu0 0.0
    %559 = vmatprep.subr.mxu0 0.0
    %560 = vmatpush1.msra.mxu0 0.0
    %561 = vmatprep.subr.mxu0 0.0
    %562 = vmatpush1.msra.mxu0 0.0
    %563 = vmatprep.subr.mxu0 0.0
    %564 = vmatpush1.msra.mxu0 0.0
    %565 = vmatprep.subr.mxu0 0.0
    %566 = vmatpush1.msra.mxu0 0.0
    %567 = vmatprep.subr.mxu0 0.0
    %568 = vmatpush1.msra.mxu0 0.0
    %569 = vmatprep.subr.mxu0 0.0
    %570 = vmatpush1.msra.mxu0 0.0
    %571 = vmatprep.subr.mxu0 0.0
    %572 = vmatpush1.msra.mxu0 0.0
    %573 = vmatprep.subr.mxu0 0.0
    %574 = vmatpush1.msra.mxu0 0.0
    %575 = vmatprep.subr.mxu0 0.0
    %576 = vmatpush1.msra.mxu0 0.0
    %577 = vmatprep.mubr.f32.mxu0 0.0
    %578 = vmatmul.mubr.f32.gmra.mrb[0].mxu0 %v511
    %v579 = vpop.f32.mrb[0].mxu0
    %v580 = vadd.f32 0.0, %v579
    %v581 = vpop.f32.mrb[0].mxu0
    %v582 = vadd.f32 0.0, %v581
    %583 = vdwg.mxu0
    %v584 = vadd.f32 %v582, %v114
    %v585 = vxor.u32 %v584, 2147483648
    %v586 = vmul.f32 %v585, 1.442695
    %v587 = vpow.pop %v586
    %v588 = vadd.f32 %v587, 1.0
    %v589 = vrcp.pop %v588
    %v590 = vmul.f32 1.0, %v589
    %v591 = vtanh.pop %v584
    %v592 = vmul.f32 %v590, %v467
    %594 = vrot.lane.b32.xlu0 %v591, 64
    %v595 = vpop.permute.xlu0 %594
    %v597 = vmul.f32 %v590, %v595
    %599 = vrot.lane.b32.xlu0 %v597, 32
    %v600 = vpop.permute.xlu0 %599
    %v602 = vadd.f32 %v592, %v600
    %v603 = vtanh.pop %v602
    %605 = vrot.lane.b32.xlu0 %v603, 64
    %v606 = vpop.permute.xlu0 %605
    %v608 = vmul.f32 %v590, %v606
    %s609 = scalar_lea.vmem [#allocation2], 24
    %v610 = vld [vmem:[%s609] sm:$0xff]
    %v611 = vadd.f32 %v610, %v580
    %v612 = vxor.u32 %v611, 2147483648
    %v613 = vmul.f32 %v612, 1.442695
    %v614 = vpow.pop %v613
    %v615 = vadd.f32 %v614, 1.0
    %v616 = vrcp.pop %v615
    %v617 = vmul.f32 1.0, %v616
    %v618 = vtanh.pop %v611
    %v619 = vmul.f32 %v617, %v494
    %621 = vrot.lane.b32.xlu0 %v618, 64
    %v622 = vpop.permute.xlu0 %621
    %v624 = vmul.f32 %v617, %v622
    %626 = vrot.lane.b32.xlu0 %v624, 32
    %v627 = vpop.permute.xlu0 %626
    %v629 = vadd.f32 %v619, %v627
    %v630 = vtanh.pop %v629
    %632 = vrot.lane.b32.xlu0 %v630, 64
    %v633 = vpop.permute.xlu0 %632
    %v635 = vmul.f32 %v617, %v633
    %637 = vrot.lane.b32.xlu0 %v635, 32
    %v638 = vpop.permute.xlu0 %637
    %641 = vrot.lane.b32.xlu0 %v608, 64
    %v642 = vpop.permute.xlu0 %641
    %v644 = vsel %vm122, %v638, %v642
    %v646 = vsel %vm235, %v644, 0
    %648 = vmatprep.subr.mxu0 %v94
    %649 = vmatpush1.msra.mxu0 %v93
    %650 = vmatprep.subr.mxu0 %v96
    %651 = vmatpush1.msra.mxu0 %v95
    %652 = vmatprep.subr.mxu0 %v98
    %653 = vmatpush1.msra.mxu0 %v97
    %654 = vmatprep.subr.mxu0 %v100
    %655 = vmatpush1.msra.mxu0 %v99
    %656 = vmatprep.subr.mxu0 %v102
    %657 = vmatpush1.msra.mxu0 %v101
    %658 = vmatprep.subr.mxu0 %v104
    %659 = vmatpush1.msra.mxu0 %v103
    %660 = vmatprep.subr.mxu0 %v106
    %661 = vmatpush1.msra.mxu0 %v105
    %662 = vmatprep.subr.mxu0 %v108
    %663 = vmatpush1.msra.mxu0 %v107
    %664 = vmatprep.subr.mxu0 0.0
    %665 = vmatpush1.msra.mxu0 0.0
    %666 = vmatprep.subr.mxu0 0.0
    %667 = vmatpush1.msra.mxu0 0.0
    %668 = vmatprep.subr.mxu0 0.0
    %669 = vmatpush1.msra.mxu0 0.0
    %670 = vmatprep.subr.mxu0 0.0
    %671 = vmatpush1.msra.mxu0 0.0
    %672 = vmatprep.subr.mxu0 0.0
    %673 = vmatpush1.msra.mxu0 0.0
    %674 = vmatprep.subr.mxu0 0.0
    %675 = vmatpush1.msra.mxu0 0.0
    %676 = vmatprep.subr.mxu0 0.0
    %677 = vmatpush1.msra.mxu0 0.0
    %678 = vmatprep.subr.mxu0 0.0
    %679 = vmatpush1.msra.mxu0 0.0
    %680 = vmatprep.subr.mxu0 0.0
    %681 = vmatpush1.msra.mxu0 0.0
    %682 = vmatprep.subr.mxu0 0.0
    %683 = vmatpush1.msra.mxu0 0.0
    %684 = vmatprep.subr.mxu0 0.0
    %685 = vmatpush1.msra.mxu0 0.0
    %686 = vmatprep.subr.mxu0 0.0
    %687 = vmatpush1.msra.mxu0 0.0
    %688 = vmatprep.subr.mxu0 0.0
    %689 = vmatpush1.msra.mxu0 0.0
    %690 = vmatprep.subr.mxu0 0.0
    %691 = vmatpush1.msra.mxu0 0.0
    %692 = vmatprep.subr.mxu0 0.0
    %693 = vmatpush1.msra.mxu0 0.0
    %694 = vmatprep.subr.mxu0 0.0
    %695 = vmatpush1.msra.mxu0 0.0
    %696 = vmatprep.subr.mxu0 0.0
    %697 = vmatpush1.msra.mxu0 0.0
    %698 = vmatprep.subr.mxu0 0.0
    %699 = vmatpush1.msra.mxu0 0.0
    %700 = vmatprep.subr.mxu0 0.0
    %701 = vmatpush1.msra.mxu0 0.0
    %702 = vmatprep.subr.mxu0 0.0
    %703 = vmatpush1.msra.mxu0 0.0
    %704 = vmatprep.subr.mxu0 0.0
    %705 = vmatpush1.msra.mxu0 0.0
    %706 = vmatprep.subr.mxu0 0.0
    %707 = vmatpush1.msra.mxu0 0.0
    %708 = vmatprep.subr.mxu0 0.0
    %709 = vmatpush1.msra.mxu0 0.0
    %710 = vmatprep.subr.mxu0 0.0
    %711 = vmatpush1.msra.mxu0 0.0
    %712 = vmatprep.mubr.f32.mxu0 0.0
    %713 = vmatmul.mubr.f32.gmra.mrb[0].mxu0 %v646
    %v714 = vpop.f32.mrb[0].mxu0
    %v715 = vadd.f32 0.0, %v714
    %v716 = vpop.f32.mrb[0].mxu0
    %v717 = vadd.f32 0.0, %v716
    %718 = vdwg.mxu0
    %v719 = vadd.f32 %v717, %v114
    %v720 = vxor.u32 %v719, 2147483648
    %v721 = vmul.f32 %v720, 1.442695
    %v722 = vpow.pop %v721
    %v723 = vadd.f32 %v722, 1.0
    %v724 = vrcp.pop %v723
    %v725 = vmul.f32 1.0, %v724
    %v726 = vtanh.pop %v719
    %v727 = vmul.f32 %v725, %v602
    %729 = vrot.lane.b32.xlu0 %v726, 64
    %v730 = vpop.permute.xlu0 %729
    %v732 = vmul.f32 %v725, %v730
    %734 = vrot.lane.b32.xlu0 %v732, 32
    %v735 = vpop.permute.xlu0 %734
    %v737 = vadd.f32 %v727, %v735
    %v738 = vtanh.pop %v737
    %740 = vrot.lane.b32.xlu0 %v738, 64
    %v741 = vpop.permute.xlu0 %740
    %v743 = vmul.f32 %v725, %v741
    %744 = vrot.lane.b32.xlu0 %v338, 32
    %v745 = vpop.permute.xlu0 %744
    %747 = vrot.lane.b32.xlu0 %v608, 96
    %v748 = vpop.permute.xlu0 %747
    %v750 = vsel %vm122, %v745, %v507
    %v751 = vsel %vm235, %v750, %v748
    %vm752 = vcmask 785408
    %v753 = vsel %vm752, %v751, %v743
    %754 = vst [vmem:[#allocation10] sm:$0xff] %v753
    %s755 = scalar_lea.vmem [#allocation2], 32
    %v756 = vld [vmem:[%s755] sm:$0xff]
    %v757 = vadd.f32 %v756, %v715
    %v758 = vxor.u32 %v757, 2147483648
    %v759 = vmul.f32 %v758, 1.442695
    %v760 = vpow.pop %v759
    %v761 = vadd.f32 %v760, 1.0
    %v762 = vrcp.pop %v761
    %v763 = vmul.f32 1.0, %v762
    %v764 = vtanh.pop %v757
    %v765 = vmul.f32 %v763, %v629
    %767 = vrot.lane.b32.xlu0 %v764, 64
    %v768 = vpop.permute.xlu0 %767
    %v770 = vmul.f32 %v763, %v768
    %772 = vrot.lane.b32.xlu0 %v770, 32
    %v773 = vpop.permute.xlu0 %772
    %v775 = vadd.f32 %v765, %v773
    %v776 = vtanh.pop %v775
    %778 = vrot.lane.b32.xlu0 %v776, 64
    %v779 = vpop.permute.xlu0 %778
    %v781 = vmul.f32 %v763, %v779
    %783 = vrot.lane.b32.xlu0 %v781, 32
    %v784 = vpop.permute.xlu0 %783
    %787 = vrot.lane.b32.xlu0 %v743, 64
    %v788 = vpop.permute.xlu0 %787
    %v790 = vsel %vm122, %v784, %v788
    %v792 = vsel %vm235, %v790, 0
    %794 = vmatprep.subr.mxu0 %v94
    %795 = vmatpush1.msra.mxu0 %v93
    %796 = vmatprep.subr.mxu0 %v96
    %797 = vmatpush1.msra.mxu0 %v95
    %798 = vmatprep.subr.mxu0 %v98
    %799 = vmatpush1.msra.mxu0 %v97
    %800 = vmatprep.subr.mxu0 %v100
    %801 = vmatpush1.msra.mxu0 %v99
    %802 = vmatprep.subr.mxu0 %v102
    %803 = vmatpush1.msra.mxu0 %v101
    %804 = vmatprep.subr.mxu0 %v104
    %805 = vmatpush1.msra.mxu0 %v103
    %806 = vmatprep.subr.mxu0 %v106
    %807 = vmatpush1.msra.mxu0 %v105
    %808 = vmatprep.subr.mxu0 %v108
    %809 = vmatpush1.msra.mxu0 %v107
    %810 = vmatprep.subr.mxu0 0.0
    %811 = vmatpush1.msra.mxu0 0.0
    %812 = vmatprep.subr.mxu0 0.0
    %813 = vmatpush1.msra.mxu0 0.0
    %814 = vmatprep.subr.mxu0 0.0
    %815 = vmatpush1.msra.mxu0 0.0
    %816 = vmatprep.subr.mxu0 0.0
    %817 = vmatpush1.msra.mxu0 0.0
    %818 = vmatprep.subr.mxu0 0.0
    %819 = vmatpush1.msra.mxu0 0.0
    %820 = vmatprep.subr.mxu0 0.0
    %821 = vmatpush1.msra.mxu0 0.0
    %822 = vmatprep.subr.mxu0 0.0
    %823 = vmatpush1.msra.mxu0 0.0
    %824 = vmatprep.subr.mxu0 0.0
    %825 = vmatpush1.msra.mxu0 0.0
    %826 = vmatprep.subr.mxu0 0.0
    %827 = vmatpush1.msra.mxu0 0.0
    %828 = vmatprep.subr.mxu0 0.0
    %829 = vmatpush1.msra.mxu0 0.0
    %830 = vmatprep.subr.mxu0 0.0
    %831 = vmatpush1.msra.mxu0 0.0
    %832 = vmatprep.subr.mxu0 0.0
    %833 = vmatpush1.msra.mxu0 0.0
    %834 = vmatprep.subr.mxu0 0.0
    %835 = vmatpush1.msra.mxu0 0.0
    %836 = vmatprep.subr.mxu0 0.0
    %837 = vmatpush1.msra.mxu0 0.0
    %838 = vmatprep.subr.mxu0 0.0
    %839 = vmatpush1.msra.mxu0 0.0
    %840 = vmatprep.subr.mxu0 0.0
    %841 = vmatpush1.msra.mxu0 0.0
    %842 = vmatprep.subr.mxu0 0.0
    %843 = vmatpush1.msra.mxu0 0.0
    %844 = vmatprep.subr.mxu0 0.0
    %845 = vmatpush1.msra.mxu0 0.0
    %846 = vmatprep.subr.mxu0 0.0
    %847 = vmatpush1.msra.mxu0 0.0
    %848 = vmatprep.subr.mxu0 0.0
    %849 = vmatpush1.msra.mxu0 0.0
    %850 = vmatprep.subr.mxu0 0.0
    %851 = vmatpush1.msra.mxu0 0.0
    %852 = vmatprep.subr.mxu0 0.0
    %853 = vmatpush1.msra.mxu0 0.0
    %854 = vmatprep.subr.mxu0 0.0
    %855 = vmatpush1.msra.mxu0 0.0
    %856 = vmatprep.subr.mxu0 0.0
    %857 = vmatpush1.msra.mxu0 0.0
    %858 = vmatprep.mubr.f32.mxu0 0.0
    %859 = vmatmul.mubr.f32.gmra.mrb[0].mxu0 %v792
    %v860 = vpop.f32.mrb[0].mxu0
    %v861 = vadd.f32 0.0, %v860
    %v862 = vpop.f32.mrb[0].mxu0
    %v863 = vadd.f32 0.0, %v862
    %864 = vdwg.mxu0
    %v865 = vadd.f32 %v863, %v114
    %v866 = vxor.u32 %v865, 2147483648
    %v867 = vmul.f32 %v866, 1.442695
    %v868 = vpow.pop %v867
    %v869 = vadd.f32 %v868, 1.0
    %v870 = vrcp.pop %v869
    %v871 = vmul.f32 1.0, %v870
    %v872 = vtanh.pop %v865
    %v873 = vmul.f32 %v871, %v737
    %875 = vrot.lane.b32.xlu0 %v872, 64
    %v876 = vpop.permute.xlu0 %875
    %v878 = vmul.f32 %v871, %v876
    %880 = vrot.lane.b32.xlu0 %v878, 32
    %v881 = vpop.permute.xlu0 %880
    %v883 = vadd.f32 %v873, %v881
    %v884 = vtanh.pop %v883
    %886 = vrot.lane.b32.xlu0 %v884, 64
    %v887 = vpop.permute.xlu0 %886
    %v889 = vmul.f32 %v871, %v887
    %s890 = scalar_lea.vmem [#allocation2], 40
    %v891 = vld [vmem:[%s890] sm:$0xff]
    %v892 = vadd.f32 %v891, %v861
    %v893 = vxor.u32 %v892, 2147483648
    %v894 = vmul.f32 %v893, 1.442695
    %v895 = vpow.pop %v894
    %v896 = vadd.f32 %v895, 1.0
    %v897 = vrcp.pop %v896
    %v898 = vmul.f32 1.0, %v897
    %v899 = vtanh.pop %v892
    %v900 = vmul.f32 %v898, %v775
    %902 = vrot.lane.b32.xlu0 %v899, 64
    %v903 = vpop.permute.xlu0 %902
    %v905 = vmul.f32 %v898, %v903
    %907 = vrot.lane.b32.xlu0 %v905, 32
    %v908 = vpop.permute.xlu0 %907
    %v910 = vadd.f32 %v900, %v908
    %v911 = vtanh.pop %v910
    %913 = vrot.lane.b32.xlu0 %v911, 64
    %v914 = vpop.permute.xlu0 %913
    %v916 = vmul.f32 %v898, %v914
    %918 = vrot.lane.b32.xlu0 %v916, 32
    %v919 = vpop.permute.xlu0 %918
    %922 = vrot.lane.b32.xlu0 %v889, 64
    %v923 = vpop.permute.xlu0 %922
    %v925 = vsel %vm122, %v919, %v923
    %v927 = vsel %vm235, %v925, 0
    %929 = vmatprep.subr.mxu0 %v94
    %930 = vmatpush1.msra.mxu0 %v93
    %931 = vmatprep.subr.mxu0 %v96
    %932 = vmatpush1.msra.mxu0 %v95
    %933 = vmatprep.subr.mxu0 %v98
    %934 = vmatpush1.msra.mxu0 %v97
    %935 = vmatprep.subr.mxu0 %v100
    %936 = vmatpush1.msra.mxu0 %v99
    %937 = vmatprep.subr.mxu0 %v102
    %938 = vmatpush1.msra.mxu0 %v101
    %939 = vmatprep.subr.mxu0 %v104
    %940 = vmatpush1.msra.mxu0 %v103
    %941 = vmatprep.subr.mxu0 %v106
    %942 = vmatpush1.msra.mxu0 %v105
    %943 = vmatprep.subr.mxu0 %v108
    %944 = vmatpush1.msra.mxu0 %v107
    %945 = vmatprep.subr.mxu0 0.0
    %946 = vmatpush1.msra.mxu0 0.0
    %947 = vmatprep.subr.mxu0 0.0
    %948 = vmatpush1.msra.mxu0 0.0
    %949 = vmatprep.subr.mxu0 0.0
    %950 = vmatpush1.msra.mxu0 0.0
    %951 = vmatprep.subr.mxu0 0.0
    %952 = vmatpush1.msra.mxu0 0.0
    %953 = vmatprep.subr.mxu0 0.0
    %954 = vmatpush1.msra.mxu0 0.0
    %955 = vmatprep.subr.mxu0 0.0
    %956 = vmatpush1.msra.mxu0 0.0
    %957 = vmatprep.subr.mxu0 0.0
    %958 = vmatpush1.msra.mxu0 0.0
    %959 = vmatprep.subr.mxu0 0.0
    %960 = vmatpush1.msra.mxu0 0.0
    %961 = vmatprep.subr.mxu0 0.0
    %962 = vmatpush1.msra.mxu0 0.0
    %963 = vmatprep.subr.mxu0 0.0
    %964 = vmatpush1.msra.mxu0 0.0
    %965 = vmatprep.subr.mxu0 0.0
    %966 = vmatpush1.msra.mxu0 0.0
    %967 = vmatprep.subr.mxu0 0.0
    %968 = vmatpush1.msra.mxu0 0.0
    %969 = vmatprep.subr.mxu0 0.0
    %970 = vmatpush1.msra.mxu0 0.0
    %971 = vmatprep.subr.mxu0 0.0
    %972 = vmatpush1.msra.mxu0 0.0
    %973 = vmatprep.subr.mxu0 0.0
    %974 = vmatpush1.msra.mxu0 0.0
    %975 = vmatprep.subr.mxu0 0.0
    %976 = vmatpush1.msra.mxu0 0.0
    %977 = vmatprep.subr.mxu0 0.0
    %978 = vmatpush1.msra.mxu0 0.0
    %979 = vmatprep.subr.mxu0 0.0
    %980 = vmatpush1.msra.mxu0 0.0
    %981 = vmatprep.subr.mxu0 0.0
    %982 = vmatpush1.msra.mxu0 0.0
    %983 = vmatprep.subr.mxu0 0.0
    %984 = vmatpush1.msra.mxu0 0.0
    %985 = vmatprep.subr.mxu0 0.0
    %986 = vmatpush1.msra.mxu0 0.0
    %987 = vmatprep.subr.mxu0 0.0
    %988 = vmatpush1.msra.mxu0 0.0
    %989 = vmatprep.subr.mxu0 0.0
    %990 = vmatpush1.msra.mxu0 0.0
    %991 = vmatprep.subr.mxu0 0.0
    %992 = vmatpush1.msra.mxu0 0.0
    %993 = vmatprep.mubr.f32.mxu0 0.0
    %994 = vmatmul.mubr.f32.gmra.mrb[0].mxu0 %v927
    %v995 = vpop.f32.mrb[0].mxu0
    %v996 = vadd.f32 0.0, %v995
    %v997 = vpop.f32.mrb[0].mxu0
    %v998 = vadd.f32 0.0, %v997
    %999 = vdwg.mxu0
    %v1000 = vadd.f32 %v998, %v114
    %v1001 = vxor.u32 %v1000, 2147483648
    %v1002 = vmul.f32 %v1001, 1.442695
    %v1003 = vpow.pop %v1002
    %v1004 = vadd.f32 %v1003, 1.0
    %v1005 = vrcp.pop %v1004
    %v1006 = vmul.f32 1.0, %v1005
    %v1007 = vtanh.pop %v1000
    %v1008 = vmul.f32 %v1006, %v883
    %1010 = vrot.lane.b32.xlu0 %v1007, 64
    %v1011 = vpop.permute.xlu0 %1010
    %v1013 = vmul.f32 %v1006, %v1011
    %1015 = vrot.lane.b32.xlu0 %v1013, 32
    %v1016 = vpop.permute.xlu0 %1015
    %v1018 = vadd.f32 %v1008, %v1016
    %v1019 = vtanh.pop %v1018
    %1021 = vrot.lane.b32.xlu0 %v1019, 64
    %v1022 = vpop.permute.xlu0 %1021
    %v1024 = vmul.f32 %v1006, %v1022
    %s1025 = scalar_lea.vmem [#allocation2], 48
    %v1026 = vld [vmem:[%s1025] sm:$0xff]
    %v1027 = vadd.f32 %v1026, %v996
    %v1028 = vxor.u32 %v1027, 2147483648
    %v1029 = vmul.f32 %v1028, 1.442695
    %v1030 = vpow.pop %v1029
    %v1031 = vadd.f32 %v1030, 1.0
    %v1032 = vrcp.pop %v1031
    %v1033 = vmul.f32 1.0, %v1032
    %v1034 = vtanh.pop %v1027
    %v1035 = vmul.f32 %v1033, %v910
    %1037 = vrot.lane.b32.xlu0 %v1034, 64
    %v1038 = vpop.permute.xlu0 %1037
    %v1040 = vmul.f32 %v1033, %v1038
    %1042 = vrot.lane.b32.xlu0 %v1040, 32
    %v1043 = vpop.permute.xlu0 %1042
    %v1045 = vadd.f32 %v1035, %v1043
    %v1046 = vtanh.pop %v1045
    %1048 = vrot.lane.b32.xlu0 %v1046, 64
    %v1049 = vpop.permute.xlu0 %1048
    %v1051 = vmul.f32 %v1033, %v1049
    %1053 = vrot.lane.b32.xlu0 %v1051, 32
    %v1054 = vpop.permute.xlu0 %1053
    %1057 = vrot.lane.b32.xlu0 %v1024, 64
    %v1058 = vpop.permute.xlu0 %1057
    %v1060 = vsel %vm122, %v1054, %v1058
    %v1062 = vsel %vm235, %v1060, 0
    %1064 = vmatprep.subr.mxu0 %v94
    %1065 = vmatpush1.msra.mxu0 %v93
    %1066 = vmatprep.subr.mxu0 %v96
    %1067 = vmatpush1.msra.mxu0 %v95
    %1068 = vmatprep.subr.mxu0 %v98
    %1069 = vmatpush1.msra.mxu0 %v97
    %1070 = vmatprep.subr.mxu0 %v100
    %1071 = vmatpush1.msra.mxu0 %v99
    %1072 = vmatprep.subr.mxu0 %v102
    %1073 = vmatpush1.msra.mxu0 %v101
    %1074 = vmatprep.subr.mxu0 %v104
    %1075 = vmatpush1.msra.mxu0 %v103
    %1076 = vmatprep.subr.mxu0 %v106
    %1077 = vmatpush1.msra.mxu0 %v105
    %1078 = vmatprep.subr.mxu0 %v108
    %1079 = vmatpush1.msra.mxu0 %v107
    %1080 = vmatprep.subr.mxu0 0.0
    %1081 = vmatpush1.msra.mxu0 0.0
    %1082 = vmatprep.subr.mxu0 0.0
    %1083 = vmatpush1.msra.mxu0 0.0
    %1084 = vmatprep.subr.mxu0 0.0
    %1085 = vmatpush1.msra.mxu0 0.0
    %1086 = vmatprep.subr.mxu0 0.0
    %1087 = vmatpush1.msra.mxu0 0.0
    %1088 = vmatprep.subr.mxu0 0.0
    %1089 = vmatpush1.msra.mxu0 0.0
    %1090 = vmatprep.subr.mxu0 0.0
    %1091 = vmatpush1.msra.mxu0 0.0
    %1092 = vmatprep.subr.mxu0 0.0
    %1093 = vmatpush1.msra.mxu0 0.0
    %1094 = vmatprep.subr.mxu0 0.0
    %1095 = vmatpush1.msra.mxu0 0.0
    %1096 = vmatprep.subr.mxu0 0.0
    %1097 = vmatpush1.msra.mxu0 0.0
    %1098 = vmatprep.subr.mxu0 0.0
    %1099 = vmatpush1.msra.mxu0 0.0
    %1100 = vmatprep.subr.mxu0 0.0
    %1101 = vmatpush1.msra.mxu0 0.0
    %1102 = vmatprep.subr.mxu0 0.0
    %1103 = vmatpush1.msra.mxu0 0.0
    %1104 = vmatprep.subr.mxu0 0.0
    %1105 = vmatpush1.msra.mxu0 0.0
    %1106 = vmatprep.subr.mxu0 0.0
    %1107 = vmatpush1.msra.mxu0 0.0
    %1108 = vmatprep.subr.mxu0 0.0
    %1109 = vmatpush1.msra.mxu0 0.0
    %1110 = vmatprep.subr.mxu0 0.0
    %1111 = vmatpush1.msra.mxu0 0.0
    %1112 = vmatprep.subr.mxu0 0.0
    %1113 = vmatpush1.msra.mxu0 0.0
    %1114 = vmatprep.subr.mxu0 0.0
    %1115 = vmatpush1.msra.mxu0 0.0
    %1116 = vmatprep.subr.mxu0 0.0
    %1117 = vmatpush1.msra.mxu0 0.0
    %1118 = vmatprep.subr.mxu0 0.0
    %1119 = vmatpush1.msra.mxu0 0.0
    %1120 = vmatprep.subr.mxu0 0.0
    %1121 = vmatpush1.msra.mxu0 0.0
    %1122 = vmatprep.subr.mxu0 0.0
    %1123 = vmatpush1.msra.mxu0 0.0
    %1124 = vmatprep.subr.mxu0 0.0
    %1125 = vmatpush1.msra.mxu0 0.0
    %1126 = vmatprep.subr.mxu0 0.0
    %1127 = vmatpush1.msra.mxu0 0.0
    %1128 = vmatprep.mubr.f32.mxu0 0.0
    %1129 = vmatmul.mubr.f32.gmra.mrb[0].mxu0 %v1062
    %v1130 = vpop.f32.mrb[0].mxu0
    %v1131 = vadd.f32 0.0, %v1130
    %v1132 = vpop.f32.mrb[0].mxu0
    %v1133 = vadd.f32 0.0, %v1132
    %1134 = vdwg.mxu0
    %v1135 = vadd.f32 %v1133, %v114
    %v1136 = vxor.u32 %v1135, 2147483648
    %v1137 = vmul.f32 %v1136, 1.442695
    %v1138 = vpow.pop %v1137
    %v1139 = vadd.f32 %v1138, 1.0
    %v1140 = vrcp.pop %v1139
    %v1141 = vmul.f32 1.0, %v1140
    %v1142 = vtanh.pop %v1135
    %v1143 = vmul.f32 %v1141, %v1018
    %1145 = vrot.lane.b32.xlu0 %v1142, 64
    %v1146 = vpop.permute.xlu0 %1145
    %v1148 = vmul.f32 %v1141, %v1146
    %1150 = vrot.lane.b32.xlu0 %v1148, 32
    %v1151 = vpop.permute.xlu0 %1150
    %v1153 = vadd.f32 %v1143, %v1151
    %v1154 = vtanh.pop %v1153
    %1156 = vrot.lane.b32.xlu0 %v1154, 64
    %v1157 = vpop.permute.xlu0 %1156
    %v1159 = vmul.f32 %v1141, %v1157
    %s1160 = scalar_lea.vmem [#allocation2], 56
    %v1161 = vld [vmem:[%s1160] sm:$0xff]
    %v1162 = vadd.f32 %v1161, %v1131
    %v1163 = vxor.u32 %v1162, 2147483648
    %v1164 = vmul.f32 %v1163, 1.442695
    %v1165 = vpow.pop %v1164
    %v1166 = vadd.f32 %v1165, 1.0
    %v1167 = vrcp.pop %v1166
    %v1168 = vmul.f32 1.0, %v1167
    %v1169 = vtanh.pop %v1162
    %v1170 = vmul.f32 %v1168, %v1045
    %1172 = vrot.lane.b32.xlu0 %v1169, 64
    %v1173 = vpop.permute.xlu0 %1172
    %v1175 = vmul.f32 %v1168, %v1173
    %1177 = vrot.lane.b32.xlu0 %v1175, 32
    %v1178 = vpop.permute.xlu0 %1177
    %v1180 = vadd.f32 %v1170, %v1178
    %v1181 = vtanh.pop %v1180
    %1183 = vrot.lane.b32.xlu0 %v1181, 64
    %v1184 = vpop.permute.xlu0 %1183
    %v1186 = vmul.f32 %v1168, %v1184
    %1188 = vrot.lane.b32.xlu0 %v1186, 32
    %v1189 = vpop.permute.xlu0 %1188
    %1192 = vrot.lane.b32.xlu0 %v1159, 64
    %v1193 = vpop.permute.xlu0 %1192
    %v1195 = vsel %vm122, %v1189, %v1193
    %v1197 = vsel %vm235, %v1195, 0
    %1199 = vmatprep.subr.mxu0 %v94
    %1200 = vmatpush1.msra.mxu0 %v93
    %1201 = vmatprep.subr.mxu0 %v96
    %1202 = vmatpush1.msra.mxu0 %v95
    %1203 = vmatprep.subr.mxu0 %v98
    %1204 = vmatpush1.msra.mxu0 %v97
    %1205 = vmatprep.subr.mxu0 %v100
    %1206 = vmatpush1.msra.mxu0 %v99
    %1207 = vmatprep.subr.mxu0 %v102
    %1208 = vmatpush1.msra.mxu0 %v101
    %1209 = vmatprep.subr.mxu0 %v104
    %1210 = vmatpush1.msra.mxu0 %v103
    %1211 = vmatprep.subr.mxu0 %v106
    %1212 = vmatpush1.msra.mxu0 %v105
    %1213 = vmatprep.subr.mxu0 %v108
    %1214 = vmatpush1.msra.mxu0 %v107
    %1215 = vmatprep.subr.mxu0 0.0
    %1216 = vmatpush1.msra.mxu0 0.0
    %1217 = vmatprep.subr.mxu0 0.0
    %1218 = vmatpush1.msra.mxu0 0.0
    %1219 = vmatprep.subr.mxu0 0.0
    %1220 = vmatpush1.msra.mxu0 0.0
    %1221 = vmatprep.subr.mxu0 0.0
    %1222 = vmatpush1.msra.mxu0 0.0
    %1223 = vmatprep.subr.mxu0 0.0
    %1224 = vmatpush1.msra.mxu0 0.0
    %1225 = vmatprep.subr.mxu0 0.0
    %1226 = vmatpush1.msra.mxu0 0.0
    %1227 = vmatprep.subr.mxu0 0.0
    %1228 = vmatpush1.msra.mxu0 0.0
    %1229 = vmatprep.subr.mxu0 0.0
    %1230 = vmatpush1.msra.mxu0 0.0
    %1231 = vmatprep.subr.mxu0 0.0
    %1232 = vmatpush1.msra.mxu0 0.0
    %1233 = vmatprep.subr.mxu0 0.0
    %1234 = vmatpush1.msra.mxu0 0.0
    %1235 = vmatprep.subr.mxu0 0.0
    %1236 = vmatpush1.msra.mxu0 0.0
    %1237 = vmatprep.subr.mxu0 0.0
    %1238 = vmatpush1.msra.mxu0 0.0
    %1239 = vmatprep.subr.mxu0 0.0
    %1240 = vmatpush1.msra.mxu0 0.0
    %1241 = vmatprep.subr.mxu0 0.0
    %1242 = vmatpush1.msra.mxu0 0.0
    %1243 = vmatprep.subr.mxu0 0.0
    %1244 = vmatpush1.msra.mxu0 0.0
    %1245 = vmatprep.subr.mxu0 0.0
    %1246 = vmatpush1.msra.mxu0 0.0
    %1247 = vmatprep.subr.mxu0 0.0
    %1248 = vmatpush1.msra.mxu0 0.0
    %1249 = vmatprep.subr.mxu0 0.0
    %1250 = vmatpush1.msra.mxu0 0.0
    %1251 = vmatprep.subr.mxu0 0.0
    %1252 = vmatpush1.msra.mxu0 0.0
    %1253 = vmatprep.subr.mxu0 0.0
    %1254 = vmatpush1.msra.mxu0 0.0
    %1255 = vmatprep.subr.mxu0 0.0
    %1256 = vmatpush1.msra.mxu0 0.0
    %1257 = vmatprep.subr.mxu0 0.0
    %1258 = vmatpush1.msra.mxu0 0.0
    %1259 = vmatprep.subr.mxu0 0.0
    %1260 = vmatpush1.msra.mxu0 0.0
    %1261 = vmatprep.subr.mxu0 0.0
    %1262 = vmatpush1.msra.mxu0 0.0
    %1263 = vmatprep.mubr.f32.mxu0 0.0
    %1264 = vmatmul.mubr.f32.gmra.mrb[0].mxu0 %v1197
    %v1265 = vpop.f32.mrb[0].mxu0
    %v1266 = vpop.f32.mrb[0].mxu0
    %v1267 = vadd.f32 0.0, %v1266
    %1268 = vdwg.mxu0
    %v1269 = vadd.f32 %v1267, %v114
    %v1270 = vxor.u32 %v1269, 2147483648
    %v1271 = vmul.f32 %v1270, 1.442695
    %v1272 = vpow.pop %v1271
    %v1273 = vadd.f32 %v1272, 1.0
    %v1274 = vrcp.pop %v1273
    %v1275 = vmul.f32 1.0, %v1274
    %v1276 = vtanh.pop %v1269
    %v1277 = vmul.f32 %v1275, %v1153
    %1279 = vrot.lane.b32.xlu0 %v1276, 64
    %v1280 = vpop.permute.xlu0 %1279
    %v1282 = vmul.f32 %v1275, %v1280
    %1284 = vrot.lane.b32.xlu0 %v1282, 32
    %v1285 = vpop.permute.xlu0 %1284
    %v1287 = vadd.f32 %v1277, %v1285
    %v1288 = vtanh.pop %v1287
    %1290 = vrot.lane.b32.xlu0 %v1288, 64
    %v1291 = vpop.permute.xlu0 %1290
    %v1293 = vmul.f32 %v1275, %v1291
    %1294 = vrot.lane.b32.xlu0 %v889, 32
    %v1295 = vpop.permute.xlu0 %1294
    %1297 = vrot.lane.b32.xlu0 %v1159, 96
    %v1298 = vpop.permute.xlu0 %1297
    %v1300 = vsel %vm122, %v1295, %v1058
    %v1301 = vsel %vm235, %v1300, %v1298
    %v1302 = vsel %vm752, %v1301, %v1293
    %s1303 = scalar_lea.vmem [#allocation10], 8
    %1304 = vst [vmem:[%s1303] sm:$0xff] %v1302
    %1305 = vst.msk [vmem:[#allocation11] sm:$0xff] %vm122, %v1189
    %1307 = vrot.lane.b32.xlu0 %v1293, 32
    %v1308 = vpop.permute.xlu0 %1307
    %1310 = vst.msk [vmem:[%s117] sm:$0xff] %vm122, %v1308
    %1312 = vrot.lane.b32.xlu0 %v1180, 96
    %v1313 = vpop.permute.xlu0 %1312
    %1315 = vst.msk [vmem:[#allocation13] sm:$0xff] %vm122, %v1313
    %1317 = vrot.lane.b32.xlu0 %v1287, 96
    %v1318 = vpop.permute.xlu0 %1317
    %1320 = vst.msk [vmem:[%s120] sm:$0xff] %vm122, %v1318
    // Predicated region
    $region42: #{tpu_custom_call.1} parent=1 // pred_check
      _
    $region43: #{tpu_custom_call.1} parent=1 // pred_check_branch
      %1322 = sbr.rel (0) target = $region45
    $region44: #{tpu_custom_call.1} parent=1 // pred_region
      %s1324 = ssub.s32 256, 256
      %1325 = vsyncadd [#allocation4], %s1324
      %s1326 = sshll.u32 [#allocation10], 4
      %s1327 = int_to_ptr.vmem [resolvable:$true] %s1326
      %1332 = dma.vmem_to_hbm [thread:$0]  %s1327, 256, %s5, [#allocation4], 128, 128, 8
    $region45: #{tpu_custom_call.1} parent=1 // pred_fallthru
      _
    // Predicated region
    $region46: #{tpu_custom_call.1} parent=1 // pred_check
      _
    $region47: #{tpu_custom_call.1} parent=1 // pred_check_branch
      %1334 = sbr.rel (0) target = $region49
    $region48: #{tpu_custom_call.1} parent=1 // pred_region
      %s1336 = ssub.s32 256, 256
      %1337 = vsyncadd [#allocation12], %s1336
      %s1338 = sshll.u32 [#allocation11], 4
      %s1339 = int_to_ptr.vmem [resolvable:$true] %s1338
      %1344 = dma.vmem_to_hbm [thread:$0]  %s1339, 256, %s6, [#allocation12], 128, 128, 8
    $region49: #{tpu_custom_call.1} parent=1 // pred_fallthru
      _
    // Predicated region
    $region50: #{tpu_custom_call.1} parent=1 // pred_check
      _
    $region51: #{tpu_custom_call.1} parent=1 // pred_check_branch
      %1346 = sbr.rel (0) target = $region53
    $region52: #{tpu_custom_call.1} parent=1 // pred_region
      %s1348 = ssub.s32 256, 256
      %1349 = vsyncadd [#allocation12], %s1348
      %s1350 = sshll.u32 [#allocation13], 4
      %s1351 = int_to_ptr.vmem [resolvable:$true] %s1350
      %1356 = dma.vmem_to_hbm [thread:$0]  %s1351, 256, %s7, [#allocation12], 128, 128, 8
    $region53: #{tpu_custom_call.1} parent=1 // pred_fallthru
      _
    // Predicated region
    $region54: #{tpu_custom_call.1} parent=1 // pred_check
      _
    $region55: #{tpu_custom_call.1} parent=1 // pred_check_branch
      %1358 = sbr.rel (0) target = $region57
    $region56: #{tpu_custom_call.1} parent=1 // pred_region
      %1359 = dma.done [#allocation4], 256
    $region57: #{tpu_custom_call.1} parent=1 // pred_fallthru
      _
    // Predicated region
    $region58: #{tpu_custom_call.1} parent=1 // pred_check
      _
    $region59: #{tpu_custom_call.1} parent=1 // pred_check_branch
      %1361 = sbr.rel (0) target = $region61
    $region60: #{tpu_custom_call.1} parent=1 // pred_region
      %1362 = dma.done [#allocation12], 256
    $region61: #{tpu_custom_call.1} parent=1 // pred_fallthru
      _
    // Predicated region
    $region62: #{tpu_custom_call.1} parent=1 // pred_check
      _
    $region63: #{tpu_custom_call.1} parent=1 // pred_check_branch
      %1364 = sbr.rel (0) target = $region65
    $region64: #{tpu_custom_call.1} parent=1 // pred_region
      %1365 = dma.done [#allocation12], 256
    $region65: #{tpu_custom_call.1} parent=1 // pred_fallthru
      _
    %1366 = vsyncpa [#allocation3], 1
    %1367 = vsyncpa [#allocation6], 1
    %1368 = vsyncpa [#allocation9], 1
    %1369 = vsyncpa [#allocation4], 1
    %1370 = vsyncpa [#allocation12], 1

</llo_original>
